<compile_context>
chip_gen: v7x
topology: tpu7x:2x2x1
jax: 0.10.0
libtpu: 0.0.40
codegen_flags: <defaults>
</compile_context>

<pallas_src>
import math
import functools

import jax
import jax.numpy as jnp
from jax import lax
from jax.experimental import pallas as pl
from jax.experimental.pallas import tpu as pltpu


# ---------------------------------------------------------------------------
# helpers
# ---------------------------------------------------------------------------
def _choose_heads_per_group(num_heads, head_size):
    """Smallest head group whose lane width (G*hd) is a multiple of 128.

    Falls back to all heads in one group (full-extent last dim, always a legal
    BlockSpec) when no 128-aligned grouping exists (e.g. tiny test configs).
    """
    for g in range(1, num_heads + 1):
        if num_heads % g:
            continue
        if (g * head_size) % 128 == 0:
            return g
    return num_heads


def _vmem_limit_bytes():
    """Generation-aware VMEM limit: 3/4 of physical per-core VMEM.

    ~96 MiB on v5e/v6e (128 MiB parts), ~48 MiB on v7x (64 MiB per TC).
    """
    cap = 64 * 1024 * 1024  # conservative default (v7x per-TensorCore)
    try:
        cap = int(pltpu.get_tpu_info().vmem_capacity_bytes)
    except Exception:
        pass
    return max(32 * 1024 * 1024, (cap * 3) // 4)


def prepare_attention_params(params, num_attention_heads,
                             *, compute_dtype=jnp.bfloat16):
    """Build the fused/scaled/grouped QKV weights ONCE (not per forward call).

    params: 'wq','wk','wv' of shape [H, H] (PyTorch nn.Linear weight:
            y = x @ W^T + b) and 'bq','bk','bv' of shape [H].
    Returns a dict consumed by bert_self_attention().
    """
    wq, wk, wv = params["wq"], params["wk"], params["wv"]
    bq, bk, bv = params["bq"], params["bk"], params["bv"]
    H = wq.shape[0]
    nh = num_attention_heads
    assert H % nh == 0, "hidden_size must be divisible by num_attention_heads"
    hd = H // nh
    scale = 1.0 / math.sqrt(hd)

    G = _choose_heads_per_group(nh, hd)
    NG = nh // G
    Gh = G * hd

    # nn.Linear: y = x @ W^T + b.  Transpose once; fold 1/sqrt(hd) into Q.
    wqT = (wq * scale).T            # [H_in, H_out]
    wkT = wk.T
    wvT = wv.T

    def group_cols(w):              # [H, H] -> [NG, H, Gh]
        return jnp.transpose(w.reshape(H, NG, Gh), (1, 0, 2))

    def group_bias(b):              # [H] -> [NG, 1, Gh]
        return b.reshape(NG, 1, Gh)

    # Per-group fused weight: columns are [Q_group | K_group | V_group].
    wqkv = jnp.concatenate(
        [group_cols(wqT), group_cols(wkT), group_cols(wvT)], axis=-1)     # [NG, H, 3Gh]
    bqkv = jnp.concatenate(
        [group_bias(bq * scale), group_bias(bk), group_bias(bv)], axis=-1)  # [NG, 1, 3Gh]

    return {
        "wqkv": wqkv.astype(compute_dtype),   # bf16 weights: half VMEM + HBM traffic
        "bqkv": bqkv.astype(jnp.float32),     # bias stays f32 (added to f32 accum)
        "num_heads": nh,
        "head_size": hd,
        "heads_per_group": G,
        "num_groups": NG,
        "compute_dtype": compute_dtype,
    }


# ---------------------------------------------------------------------------
# kernel
# ---------------------------------------------------------------------------
def _self_attn_kernel(x_ref, wqkv_ref, bqkv_ref, mask_ref, o_ref, *,
                      heads_per_group, head_size, compute_dtype):
    # x_ref:    (bt, S, H)   bt batch rows (bt==1 except tiny-problem path)
    # wqkv_ref: (H, 3*Gh)    this head group's fused [Q|K|V] weights (Q pre-scaled)
    # bqkv_ref: (1, 3*Gh)    this head group's fused bias (f32)
    # mask_ref: (bt, 1, S)   additive attention mask
    # o_ref:    (bt, S, Gh)  lane-dense column slab of the [B, S, H] output
    G, hd = heads_per_group, head_size
    Gh = G * hd
    bt, S, _ = x_ref.shape

    # Fused Q/K/V projection: one wide MXU matmul, compute_dtype operands,
    # f32 accumulation, f32 bias add.  Rows are (bt*S) — sublane-dense.
    x2 = x_ref[...].reshape(bt * S, -1).astype(compute_dtype)
    qkv = jnp.dot(x2, wqkv_ref[...], preferred_element_type=jnp.float32)
    qkv = qkv + bqkv_ref[...]                                   # (bt*S, 3*Gh) f32

    for b in range(bt):                                          # bt == 1 except tiny path
        rows = qkv[b * S:(b + 1) * S]                            # (S, 3*Gh), 8-aligned row slice
        mask_b = mask_ref[b]                                     # (1, S) f32, broadcasts over q rows
        ctx_heads = []
        for h in range(G):                                       # G <= 4 by group sizing
            lo = h * hd
            q_h = rows[:, lo:lo + hd].astype(compute_dtype)              # pre-scaled by 1/sqrt(hd)
            k_h = rows[:, Gh + lo:Gh + lo + hd].astype(compute_dtype)
            v_h = rows[:, 2 * Gh + lo:2 * Gh + lo + hd].astype(compute_dtype)

            # attention_scores = (Q/sqrt(hd)) @ K^T — contract last dims, no transpose.
            scores = lax.dot_general(
                q_h, k_h,
                dimension_numbers=(((1,), (1,)), ((), ())),
                preferred_element_type=jnp.float32)              # (S, S) f32
            scores = scores + mask_b

            # f32 softmax stats; normalization deferred until after P @ V.
            m = jnp.max(scores, axis=-1, keepdims=True)
            e = jnp.exp(scores - m)                              # (S, S) f32
            denom = jnp.sum(e, axis=-1, keepdims=True)           # (S, 1) f32

            ctx = jnp.dot(e.astype(compute_dtype), v_h,
                          preferred_element_type=jnp.float32)    # (S, hd) f32
            # post-P·V normalization on the (S, hd) tile; reciprocal on the EUP.
            ctx_heads.append(ctx * pl.reciprocal(denom, approx=True))

        slab = jnp.concatenate(ctx_heads, axis=-1) if G > 1 else ctx_heads[0]
        o_ref[b] = slab.astype(o_ref.dtype)                      # lane-dense (S, Gh) store


# ---------------------------------------------------------------------------
# wrapper
# ---------------------------------------------------------------------------
def bert_self_attention(hidden_states, attention_mask, prepared):
    """
    hidden_states:  [B, S, H]
    attention_mask: [B, 1, 1, S] additive mask (0 / -10000)
    prepared:       output of prepare_attention_params()
    returns context_layer: [B, S, H]
    """
    B, S, H = hidden_states.shape
    hd = prepared["head_size"]
    G = prepared["heads_per_group"]
    NG = prepared["num_groups"]
    Gh = G * hd
    cdt = prepared["compute_dtype"]

    mask = attention_mask.reshape(B, 1, S).astype(jnp.float32)

    # Tiny-problem path: fold all batches into one grid step so the projection
    # sees a (B*S, H) sublane-dense slab and per-step overhead is amortized.
    tiny = (B * S <= 1024) and (S * H <= 128 * 128)
    bt = B if tiny else 1

    kernel = functools.partial(_self_attn_kernel, heads_per_group=G,
                               head_size=hd, compute_dtype=cdt)

    grid = (B // bt, NG)
    in_specs = [
        pl.BlockSpec((bt, S, H), lambda b, g: (b, 0, 0)),          # x: resident across g
        pl.BlockSpec((None, H, 3 * Gh), lambda b, g: (g, 0, 0)),   # per-group fused weight
        pl.BlockSpec((None, 1, 3 * Gh), lambda b, g: (g, 0, 0)),   # per-group fused bias
        pl.BlockSpec((bt, 1, S), lambda b, g: (b, 0, 0)),          # additive mask
    ]
    out_spec = pl.BlockSpec((bt, S, Gh), lambda b, g: (b, 0, g))   # lane-dense column slab

    return pl.pallas_call(
        kernel,
        out_shape=jax.ShapeDtypeStruct((B, S, H), hidden_states.dtype),
        grid_spec=pltpu.PrefetchScalarGridSpec(
            num_scalar_prefetch=0,
            grid=grid,
            in_specs=in_specs,
            out_specs=out_spec,
        ),
        compiler_params=pltpu.CompilerParams(
            # batch axis AND head-group axis parallel -> both v7x TCs stay busy
            dimension_semantics=("parallel", "parallel"),
            vmem_limit_bytes=_vmem_limit_bytes(),
        ),
    )(hidden_states, prepared["wqkv"], prepared["bqkv"], mask)


# ---------------------------------------------------------------------------
# pure-JAX reference (matches the PyTorch module semantics)
# ---------------------------------------------------------------------------
def _reference(hidden_states, attention_mask, params, num_attention_heads):
    B, S, H = hidden_states.shape
    nh = num_attention_heads
    hd = H // nh
    q = hidden_states @ params["wq"].T + params["bq"]
    k = hidden_states @ params["wk"].T + params["bk"]
    v = hidden_states @ params["wv"].T + params["bv"]

    def t4s(x):
        return jnp.transpose(x.reshape(B, S, nh, hd), (0, 2, 1, 3))

    q, k, v = t4s(q), t4s(k), t4s(v)
    scores = jnp.einsum("bhqd,bhkd->bhqk", q, k) / math.sqrt(hd)
    scores = scores + attention_mask
    probs = jax.nn.softmax(scores, axis=-1)
    ctx = jnp.einsum("bhqk,bhkd->bhqd", probs, v)
    return jnp.transpose(ctx, (0, 2, 1, 3)).reshape(B, S, H)


if __name__ == "__main__":
    # small config consistent with the module: hidden=32, heads=4, seq=8, batch=2
    B, S, H, NH = 2, 8, 32, 4

    key = jax.random.PRNGKey(0)
    kx, kq, kk, kv, kbq, kbk, kbv, km = jax.random.split(key, 8)

    hidden_states = jax.random.normal(kx, (B, S, H), dtype=jnp.float32)

    scale = 1.0 / math.sqrt(H)
    params = {
        "wq": jax.random.normal(kq, (H, H), dtype=jnp.float32) * scale,
        "wk": jax.random.normal(kk, (H, H), dtype=jnp.float32) * scale,
        "wv": jax.random.normal(kv, (H, H), dtype=jnp.float32) * scale,
        "bq": jax.random.normal(kbq, (H,), dtype=jnp.float32) * 0.1,
        "bk": jax.random.normal(kbk, (H,), dtype=jnp.float32) * 0.1,
        "bv": jax.random.normal(kbv, (H,), dtype=jnp.float32) * 0.1,
    }

    # standard BERT additive mask: 0 for kept positions, -10000 for masked
    keep = (jax.random.uniform(km, (B, S)) > 0.2).astype(jnp.float32)
    attention_mask = ((1.0 - keep) * -10000.0).reshape(B, 1, 1, S)

    ref = _reference(hidden_states, attention_mask, params, NH)

    # Production path: bf16 MXU operands, f32 accumulation + f32 softmax stats.
    prep_bf16 = prepare_attention_params(params, NH, compute_dtype=jnp.bfloat16)
    out_bf16 = jax.block_until_ready(
        bert_self_attention(hidden_states, attention_mask, prep_bf16))
    assert out_bf16.shape == (B, S, H)
    assert jnp.allclose(out_bf16, ref, atol=5e-2, rtol=5e-2), \
        "bf16 compute path mismatch vs reference"

    # f32 compute path: tighter check of the attention algorithm itself
    # (tolerance only loosened for the EUP approx reciprocal in the softmax).
    prep_f32 = prepare_attention_params(params, NH, compute_dtype=jnp.float32)
    out_f32 = jax.block_until_ready(
        bert_self_attention(hidden_states, attention_mask, prep_f32))
    assert jnp.allclose(out_f32, ref, atol=1e-2, rtol=1e-2), \
        "f32 compute path mismatch vs reference"

    print("KERNEL_OK")
</pallas_src>

<mosaic_0001>
module attributes {stable_mosaic.version = 11 : i64} {
  func.func @_self_attn_kernel(%arg0: i32, %arg1: i32, %arg2: memref<2x8x32xf32, #tpu.memory_space<vmem>>, %arg3: memref<1x32x96xbf16, #tpu.memory_space<vmem>>, %arg4: memref<1x1x96xf32, #tpu.memory_space<vmem>>, %arg5: memref<2x1x8xf32, #tpu.memory_space<vmem>>, %arg6: memref<2x8x32xf32, #tpu.memory_space<vmem>>) attributes {dimension_semantics = [#tpu.dimension_semantics<parallel>, #tpu.dimension_semantics<parallel>], iteration_bounds = array<i64: 1, 1>, scalar_prefetch = 0 : i64, scratch_operands = 0 : i64, tpu.core_type = #tpu.core_type<tc>, window_params = [{transform_indices = @transform_0, window_bounds = array<i64: 2, 8, 32>}, {transform_indices = @transform_1, window_bounds = array<i64: 1, 32, 96>}, {transform_indices = @transform_2, window_bounds = array<i64: 1, 1, 96>}, {transform_indices = @transform_3, window_bounds = array<i64: 2, 1, 8>}, {transform_indices = @transform_4, window_bounds = array<i64: 2, 8, 32>}]} {
    %c0 = arith.constant 0 : index
    %c0_0 = arith.constant 0 : index
    %c0_1 = arith.constant 0 : index
    %0 = vector.load %arg2[%c0, %c0_0, %c0_1] : memref<2x8x32xf32, #tpu.memory_space<vmem>>, vector<2x8x32xf32>
    %1 = vector.shape_cast %0 : vector<2x8x32xf32> to vector<16x32xf32>
    %2 = arith.truncf %1 : vector<16x32xf32> to vector<16x32xbf16>
    %c0_2 = arith.constant 0 : index
    %c0_3 = arith.constant 0 : index
    %c0_4 = arith.constant 0 : index
    %3 = vector.load %arg3[%c0_2, %c0_3, %c0_4] : memref<1x32x96xbf16, #tpu.memory_space<vmem>>, vector<1x32x96xbf16>
    %4 = vector.shape_cast %3 : vector<1x32x96xbf16> to vector<32x96xbf16>
    %cst = arith.constant dense<0.000000e+00> : vector<16x96xf32>
    %5 = tpu.matmul %2, %4, %cst {dimension_numbers = #tpu.dot_dimension_numbers<[1], [0], [0], [1], [0, 0, 1, 1], [], []>} : vector<16x32xbf16>, vector<32x96xbf16>, vector<16x96xf32> -> vector<16x96xf32>
    %c0_5 = arith.constant 0 : index
    %c0_6 = arith.constant 0 : index
    %c0_7 = arith.constant 0 : index
    %6 = vector.load %arg4[%c0_5, %c0_6, %c0_7] : memref<1x1x96xf32, #tpu.memory_space<vmem>>, vector<1x1x96xf32>
    %7 = vector.shape_cast %6 : vector<1x1x96xf32> to vector<1x96xf32>
    %8 = vector.broadcast %7 : vector<1x96xf32> to vector<16x96xf32>
    %9 = arith.addf %5, %8 : vector<16x96xf32>
    %10 = vector.extract_strided_slice %9 {offsets = [0, 0], sizes = [8, 96], strides = [1, 1]} : vector<16x96xf32> to vector<8x96xf32>
    %c0_8 = arith.constant 0 : index
    %c0_9 = arith.constant 0 : index
    %c0_10 = arith.constant 0 : index
    %11 = vector.load %arg5[%c0_8, %c0_9, %c0_10] : memref<2x1x8xf32, #tpu.memory_space<vmem>>, vector<1x1x8xf32>
    %12 = vector.shape_cast %11 : vector<1x1x8xf32> to vector<1x8xf32>
    %13 = vector.extract_strided_slice %10 {offsets = [0, 0], sizes = [8, 8], strides = [1, 1]} : vector<8x96xf32> to vector<8x8xf32>
    %14 = arith.truncf %13 : vector<8x8xf32> to vector<8x8xbf16>
    %15 = vector.extract_strided_slice %10 {offsets = [0, 32], sizes = [8, 8], strides = [1, 1]} : vector<8x96xf32> to vector<8x8xf32>
    %16 = arith.truncf %15 : vector<8x8xf32> to vector<8x8xbf16>
    %17 = vector.extract_strided_slice %10 {offsets = [0, 64], sizes = [8, 8], strides = [1, 1]} : vector<8x96xf32> to vector<8x8xf32>
    %18 = arith.truncf %17 : vector<8x8xf32> to vector<8x8xbf16>
    %cst_11 = arith.constant dense<0.000000e+00> : vector<8x8xf32>
    %19 = tpu.matmul %14, %16, %cst_11 {dimension_numbers = #tpu.dot_dimension_numbers<[1], [1], [0], [0], [0, 0, 1, 0], [], []>} : vector<8x8xbf16>, vector<8x8xbf16>, vector<8x8xf32> -> vector<8x8xf32>
    %20 = vector.broadcast %12 : vector<1x8xf32> to vector<8x8xf32>
    %21 = arith.addf %19, %20 : vector<8x8xf32>
    %cst_12 = arith.constant dense<0xFF800000> : vector<8xf32>
    %22 = vector.multi_reduction <maximumf>, %21, %cst_12 [1] : vector<8x8xf32> to vector<8xf32>
    %23 = vector.shape_cast %22 : vector<8xf32> to vector<8x1xf32>
    %24 = vector.broadcast %23 : vector<8x1xf32> to vector<8x8xf32>
    %25 = arith.subf %21, %24 : vector<8x8xf32>
    %26 = math.exp %25 : vector<8x8xf32>
    %cst_13 = arith.constant dense<0.000000e+00> : vector<8xf32>
    %27 = vector.multi_reduction <add>, %26, %cst_13 [1] : vector<8x8xf32> to vector<8xf32>
    %28 = vector.shape_cast %27 : vector<8xf32> to vector<8x1xf32>
    %29 = arith.truncf %26 : vector<8x8xf32> to vector<8x8xbf16>
    %cst_14 = arith.constant dense<0.000000e+00> : vector<8x8xf32>
    %30 = tpu.matmul %29, %18, %cst_14 {dimension_numbers = #tpu.dot_dimension_numbers<[1], [0], [0], [1], [0, 0, 1, 1], [], []>} : vector<8x8xbf16>, vector<8x8xbf16>, vector<8x8xf32> -> vector<8x8xf32>
    %31 = tpu.reciprocal %28 {approx = true} : vector<8x1xf32> -> vector<8x1xf32>
    %32 = vector.broadcast %31 : vector<8x1xf32> to vector<8x8xf32>
    %33 = arith.mulf %30, %32 : vector<8x8xf32>
    %34 = vector.extract_strided_slice %10 {offsets = [0, 8], sizes = [8, 8], strides = [1, 1]} : vector<8x96xf32> to vector<8x8xf32>
    %35 = arith.truncf %34 : vector<8x8xf32> to vector<8x8xbf16>
    %36 = vector.extract_strided_slice %10 {offsets = [0, 40], sizes = [8, 8], strides = [1, 1]} : vector<8x96xf32> to vector<8x8xf32>
    %37 = arith.truncf %36 : vector<8x8xf32> to vector<8x8xbf16>
    %38 = vector.extract_strided_slice %10 {offsets = [0, 72], sizes = [8, 8], strides = [1, 1]} : vector<8x96xf32> to vector<8x8xf32>
    %39 = arith.truncf %38 : vector<8x8xf32> to vector<8x8xbf16>
    %cst_15 = arith.constant dense<0.000000e+00> : vector<8x8xf32>
    %40 = tpu.matmul %35, %37, %cst_15 {dimension_numbers = #tpu.dot_dimension_numbers<[1], [1], [0], [0], [0, 0, 1, 0], [], []>} : vector<8x8xbf16>, vector<8x8xbf16>, vector<8x8xf32> -> vector<8x8xf32>
    %41 = vector.broadcast %12 : vector<1x8xf32> to vector<8x8xf32>
    %42 = arith.addf %40, %41 : vector<8x8xf32>
    %cst_16 = arith.constant dense<0xFF800000> : vector<8xf32>
    %43 = vector.multi_reduction <maximumf>, %42, %cst_16 [1] : vector<8x8xf32> to vector<8xf32>
    %44 = vector.shape_cast %43 : vector<8xf32> to vector<8x1xf32>
    %45 = vector.broadcast %44 : vector<8x1xf32> to vector<8x8xf32>
    %46 = arith.subf %42, %45 : vector<8x8xf32>
    %47 = math.exp %46 : vector<8x8xf32>
    %cst_17 = arith.constant dense<0.000000e+00> : vector<8xf32>
    %48 = vector.multi_reduction <add>, %47, %cst_17 [1] : vector<8x8xf32> to vector<8xf32>
    %49 = vector.shape_cast %48 : vector<8xf32> to vector<8x1xf32>
    %50 = arith.truncf %47 : vector<8x8xf32> to vector<8x8xbf16>
    %cst_18 = arith.constant dense<0.000000e+00> : vector<8x8xf32>
    %51 = tpu.matmul %50, %39, %cst_18 {dimension_numbers = #tpu.dot_dimension_numbers<[1], [0], [0], [1], [0, 0, 1, 1], [], []>} : vector<8x8xbf16>, vector<8x8xbf16>, vector<8x8xf32> -> vector<8x8xf32>
    %52 = tpu.reciprocal %49 {approx = true} : vector<8x1xf32> -> vector<8x1xf32>
    %53 = vector.broadcast %52 : vector<8x1xf32> to vector<8x8xf32>
    %54 = arith.mulf %51, %53 : vector<8x8xf32>
    %55 = vector.extract_strided_slice %10 {offsets = [0, 16], sizes = [8, 8], strides = [1, 1]} : vector<8x96xf32> to vector<8x8xf32>
    %56 = arith.truncf %55 : vector<8x8xf32> to vector<8x8xbf16>
    %57 = vector.extract_strided_slice %10 {offsets = [0, 48], sizes = [8, 8], strides = [1, 1]} : vector<8x96xf32> to vector<8x8xf32>
    %58 = arith.truncf %57 : vector<8x8xf32> to vector<8x8xbf16>
    %59 = vector.extract_strided_slice %10 {offsets = [0, 80], sizes = [8, 8], strides = [1, 1]} : vector<8x96xf32> to vector<8x8xf32>
    %60 = arith.truncf %59 : vector<8x8xf32> to vector<8x8xbf16>
    %cst_19 = arith.constant dense<0.000000e+00> : vector<8x8xf32>
    %61 = tpu.matmul %56, %58, %cst_19 {dimension_numbers = #tpu.dot_dimension_numbers<[1], [1], [0], [0], [0, 0, 1, 0], [], []>} : vector<8x8xbf16>, vector<8x8xbf16>, vector<8x8xf32> -> vector<8x8xf32>
    %62 = vector.broadcast %12 : vector<1x8xf32> to vector<8x8xf32>
    %63 = arith.addf %61, %62 : vector<8x8xf32>
    %cst_20 = arith.constant dense<0xFF800000> : vector<8xf32>
    %64 = vector.multi_reduction <maximumf>, %63, %cst_20 [1] : vector<8x8xf32> to vector<8xf32>
    %65 = vector.shape_cast %64 : vector<8xf32> to vector<8x1xf32>
    %66 = vector.broadcast %65 : vector<8x1xf32> to vector<8x8xf32>
    %67 = arith.subf %63, %66 : vector<8x8xf32>
    %68 = math.exp %67 : vector<8x8xf32>
    %cst_21 = arith.constant dense<0.000000e+00> : vector<8xf32>
    %69 = vector.multi_reduction <add>, %68, %cst_21 [1] : vector<8x8xf32> to vector<8xf32>
    %70 = vector.shape_cast %69 : vector<8xf32> to vector<8x1xf32>
    %71 = arith.truncf %68 : vector<8x8xf32> to vector<8x8xbf16>
    %cst_22 = arith.constant dense<0.000000e+00> : vector<8x8xf32>
    %72 = tpu.matmul %71, %60, %cst_22 {dimension_numbers = #tpu.dot_dimension_numbers<[1], [0], [0], [1], [0, 0, 1, 1], [], []>} : vector<8x8xbf16>, vector<8x8xbf16>, vector<8x8xf32> -> vector<8x8xf32>
    %73 = tpu.reciprocal %70 {approx = true} : vector<8x1xf32> -> vector<8x1xf32>
    %74 = vector.broadcast %73 : vector<8x1xf32> to vector<8x8xf32>
    %75 = arith.mulf %72, %74 : vector<8x8xf32>
    %76 = vector.extract_strided_slice %10 {offsets = [0, 24], sizes = [8, 8], strides = [1, 1]} : vector<8x96xf32> to vector<8x8xf32>
    %77 = arith.truncf %76 : vector<8x8xf32> to vector<8x8xbf16>
    %78 = vector.extract_strided_slice %10 {offsets = [0, 56], sizes = [8, 8], strides = [1, 1]} : vector<8x96xf32> to vector<8x8xf32>
    %79 = arith.truncf %78 : vector<8x8xf32> to vector<8x8xbf16>
    %80 = vector.extract_strided_slice %10 {offsets = [0, 88], sizes = [8, 8], strides = [1, 1]} : vector<8x96xf32> to vector<8x8xf32>
    %81 = arith.truncf %80 : vector<8x8xf32> to vector<8x8xbf16>
    %cst_23 = arith.constant dense<0.000000e+00> : vector<8x8xf32>
    %82 = tpu.matmul %77, %79, %cst_23 {dimension_numbers = #tpu.dot_dimension_numbers<[1], [1], [0], [0], [0, 0, 1, 0], [], []>} : vector<8x8xbf16>, vector<8x8xbf16>, vector<8x8xf32> -> vector<8x8xf32>
    %83 = vector.broadcast %12 : vector<1x8xf32> to vector<8x8xf32>
    %84 = arith.addf %82, %83 : vector<8x8xf32>
    %cst_24 = arith.constant dense<0xFF800000> : vector<8xf32>
    %85 = vector.multi_reduction <maximumf>, %84, %cst_24 [1] : vector<8x8xf32> to vector<8xf32>
    %86 = vector.shape_cast %85 : vector<8xf32> to vector<8x1xf32>
    %87 = vector.broadcast %86 : vector<8x1xf32> to vector<8x8xf32>
    %88 = arith.subf %84, %87 : vector<8x8xf32>
    %89 = math.exp %88 : vector<8x8xf32>
    %cst_25 = arith.constant dense<0.000000e+00> : vector<8xf32>
    %90 = vector.multi_reduction <add>, %89, %cst_25 [1] : vector<8x8xf32> to vector<8xf32>
    %91 = vector.shape_cast %90 : vector<8xf32> to vector<8x1xf32>
    %92 = arith.truncf %89 : vector<8x8xf32> to vector<8x8xbf16>
    %cst_26 = arith.constant dense<0.000000e+00> : vector<8x8xf32>
    %93 = tpu.matmul %92, %81, %cst_26 {dimension_numbers = #tpu.dot_dimension_numbers<[1], [0], [0], [1], [0, 0, 1, 1], [], []>} : vector<8x8xbf16>, vector<8x8xbf16>, vector<8x8xf32> -> vector<8x8xf32>
    %94 = tpu.reciprocal %91 {approx = true} : vector<8x1xf32> -> vector<8x1xf32>
    %95 = vector.broadcast %94 : vector<8x1xf32> to vector<8x8xf32>
    %96 = arith.mulf %93, %95 : vector<8x8xf32>
    %97 = tpu.concatenate %33, %54, %75, %96 in 1 : vector<8x8xf32>, vector<8x8xf32>, vector<8x8xf32>, vector<8x8xf32> -> vector<8x32xf32>
    %c0_27 = arith.constant 0 : index
    %c0_28 = arith.constant 0 : index
    %c0_29 = arith.constant 0 : index
    %98 = vector.load %arg6[%c0_27, %c0_28, %c0_29] : memref<2x8x32xf32, #tpu.memory_space<vmem>>, vector<1x8x32xf32>
    %99 = vector.shape_cast %98 : vector<1x8x32xf32> to vector<8x32xf32>
    %100 = vector.shape_cast %97 : vector<8x32xf32> to vector<1x8x32xf32>
    tpu.vector_store %arg6[%c0_27, %c0_28, %c0_29], %100 {strides = array<i32>} : memref<2x8x32xf32, #tpu.memory_space<vmem>>, vector<1x8x32xf32>,
    %101 = vector.extract_strided_slice %9 {offsets = [8, 0], sizes = [8, 96], strides = [1, 1]} : vector<16x96xf32> to vector<8x96xf32>
    %c1 = arith.constant 1 : index
    %c0_30 = arith.constant 0 : index
    %c0_31 = arith.constant 0 : index
    %102 = vector.load %arg5[%c1, %c0_30, %c0_31] : memref<2x1x8xf32, #tpu.memory_space<vmem>>, vector<1x1x8xf32>
    %103 = vector.shape_cast %102 : vector<1x1x8xf32> to vector<1x8xf32>
    %104 = vector.extract_strided_slice %101 {offsets = [0, 0], sizes = [8, 8], strides = [1, 1]} : vector<8x96xf32> to vector<8x8xf32>
    %105 = arith.truncf %104 : vector<8x8xf32> to vector<8x8xbf16>
    %106 = vector.extract_strided_slice %101 {offsets = [0, 32], sizes = [8, 8], strides = [1, 1]} : vector<8x96xf32> to vector<8x8xf32>
    %107 = arith.truncf %106 : vector<8x8xf32> to vector<8x8xbf16>
    %108 = vector.extract_strided_slice %101 {offsets = [0, 64], sizes = [8, 8], strides = [1, 1]} : vector<8x96xf32> to vector<8x8xf32>
    %109 = arith.truncf %108 : vector<8x8xf32> to vector<8x8xbf16>
    %cst_32 = arith.constant dense<0.000000e+00> : vector<8x8xf32>
    %110 = tpu.matmul %105, %107, %cst_32 {dimension_numbers = #tpu.dot_dimension_numbers<[1], [1], [0], [0], [0, 0, 1, 0], [], []>} : vector<8x8xbf16>, vector<8x8xbf16>, vector<8x8xf32> -> vector<8x8xf32>
    %111 = vector.broadcast %103 : vector<1x8xf32> to vector<8x8xf32>
    %112 = arith.addf %110, %111 : vector<8x8xf32>
    %cst_33 = arith.constant dense<0xFF800000> : vector<8xf32>
    %113 = vector.multi_reduction <maximumf>, %112, %cst_33 [1] : vector<8x8xf32> to vector<8xf32>
    %114 = vector.shape_cast %113 : vector<8xf32> to vector<8x1xf32>
    %115 = vector.broadcast %114 : vector<8x1xf32> to vector<8x8xf32>
    %116 = arith.subf %112, %115 : vector<8x8xf32>
    %117 = math.exp %116 : vector<8x8xf32>
    %cst_34 = arith.constant dense<0.000000e+00> : vector<8xf32>
    %118 = vector.multi_reduction <add>, %117, %cst_34 [1] : vector<8x8xf32> to vector<8xf32>
    %119 = vector.shape_cast %118 : vector<8xf32> to vector<8x1xf32>
    %120 = arith.truncf %117 : vector<8x8xf32> to vector<8x8xbf16>
    %cst_35 = arith.constant dense<0.000000e+00> : vector<8x8xf32>
    %121 = tpu.matmul %120, %109, %cst_35 {dimension_numbers = #tpu.dot_dimension_numbers<[1], [0], [0], [1], [0, 0, 1, 1], [], []>} : vector<8x8xbf16>, vector<8x8xbf16>, vector<8x8xf32> -> vector<8x8xf32>
    %122 = tpu.reciprocal %119 {approx = true} : vector<8x1xf32> -> vector<8x1xf32>
    %123 = vector.broadcast %122 : vector<8x1xf32> to vector<8x8xf32>
    %124 = arith.mulf %121, %123 : vector<8x8xf32>
    %125 = vector.extract_strided_slice %101 {offsets = [0, 8], sizes = [8, 8], strides = [1, 1]} : vector<8x96xf32> to vector<8x8xf32>
    %126 = arith.truncf %125 : vector<8x8xf32> to vector<8x8xbf16>
    %127 = vector.extract_strided_slice %101 {offsets = [0, 40], sizes = [8, 8], strides = [1, 1]} : vector<8x96xf32> to vector<8x8xf32>
    %128 = arith.truncf %127 : vector<8x8xf32> to vector<8x8xbf16>
    %129 = vector.extract_strided_slice %101 {offsets = [0, 72], sizes = [8, 8], strides = [1, 1]} : vector<8x96xf32> to vector<8x8xf32>
    %130 = arith.truncf %129 : vector<8x8xf32> to vector<8x8xbf16>
    %cst_36 = arith.constant dense<0.000000e+00> : vector<8x8xf32>
    %131 = tpu.matmul %126, %128, %cst_36 {dimension_numbers = #tpu.dot_dimension_numbers<[1], [1], [0], [0], [0, 0, 1, 0], [], []>} : vector<8x8xbf16>, vector<8x8xbf16>, vector<8x8xf32> -> vector<8x8xf32>
    %132 = vector.broadcast %103 : vector<1x8xf32> to vector<8x8xf32>
    %133 = arith.addf %131, %132 : vector<8x8xf32>
    %cst_37 = arith.constant dense<0xFF800000> : vector<8xf32>
    %134 = vector.multi_reduction <maximumf>, %133, %cst_37 [1] : vector<8x8xf32> to vector<8xf32>
    %135 = vector.shape_cast %134 : vector<8xf32> to vector<8x1xf32>
    %136 = vector.broadcast %135 : vector<8x1xf32> to vector<8x8xf32>
    %137 = arith.subf %133, %136 : vector<8x8xf32>
    %138 = math.exp %137 : vector<8x8xf32>
    %cst_38 = arith.constant dense<0.000000e+00> : vector<8xf32>
    %139 = vector.multi_reduction <add>, %138, %cst_38 [1] : vector<8x8xf32> to vector<8xf32>
    %140 = vector.shape_cast %139 : vector<8xf32> to vector<8x1xf32>
    %141 = arith.truncf %138 : vector<8x8xf32> to vector<8x8xbf16>
    %cst_39 = arith.constant dense<0.000000e+00> : vector<8x8xf32>
    %142 = tpu.matmul %141, %130, %cst_39 {dimension_numbers = #tpu.dot_dimension_numbers<[1], [0], [0], [1], [0, 0, 1, 1], [], []>} : vector<8x8xbf16>, vector<8x8xbf16>, vector<8x8xf32> -> vector<8x8xf32>
    %143 = tpu.reciprocal %140 {approx = true} : vector<8x1xf32> -> vector<8x1xf32>
    %144 = vector.broadcast %143 : vector<8x1xf32> to vector<8x8xf32>
    %145 = arith.mulf %142, %144 : vector<8x8xf32>
    %146 = vector.extract_strided_slice %101 {offsets = [0, 16], sizes = [8, 8], strides = [1, 1]} : vector<8x96xf32> to vector<8x8xf32>
    %147 = arith.truncf %146 : vector<8x8xf32> to vector<8x8xbf16>
    %148 = vector.extract_strided_slice %101 {offsets = [0, 48], sizes = [8, 8], strides = [1, 1]} : vector<8x96xf32> to vector<8x8xf32>
    %149 = arith.truncf %148 : vector<8x8xf32> to vector<8x8xbf16>
    %150 = vector.extract_strided_slice %101 {offsets = [0, 80], sizes = [8, 8], strides = [1, 1]} : vector<8x96xf32> to vector<8x8xf32>
    %151 = arith.truncf %150 : vector<8x8xf32> to vector<8x8xbf16>
    %cst_40 = arith.constant dense<0.000000e+00> : vector<8x8xf32>
    %152 = tpu.matmul %147, %149, %cst_40 {dimension_numbers = #tpu.dot_dimension_numbers<[1], [1], [0], [0], [0, 0, 1, 0], [], []>} : vector<8x8xbf16>, vector<8x8xbf16>, vector<8x8xf32> -> vector<8x8xf32>
    %153 = vector.broadcast %103 : vector<1x8xf32> to vector<8x8xf32>
    %154 = arith.addf %152, %153 : vector<8x8xf32>
    %cst_41 = arith.constant dense<0xFF800000> : vector<8xf32>
    %155 = vector.multi_reduction <maximumf>, %154, %cst_41 [1] : vector<8x8xf32> to vector<8xf32>
    %156 = vector.shape_cast %155 : vector<8xf32> to vector<8x1xf32>
    %157 = vector.broadcast %156 : vector<8x1xf32> to vector<8x8xf32>
    %158 = arith.subf %154, %157 : vector<8x8xf32>
    %159 = math.exp %158 : vector<8x8xf32>
    %cst_42 = arith.constant dense<0.000000e+00> : vector<8xf32>
    %160 = vector.multi_reduction <add>, %159, %cst_42 [1] : vector<8x8xf32> to vector<8xf32>
    %161 = vector.shape_cast %160 : vector<8xf32> to vector<8x1xf32>
    %162 = arith.truncf %159 : vector<8x8xf32> to vector<8x8xbf16>
    %cst_43 = arith.constant dense<0.000000e+00> : vector<8x8xf32>
    %163 = tpu.matmul %162, %151, %cst_43 {dimension_numbers = #tpu.dot_dimension_numbers<[1], [0], [0], [1], [0, 0, 1, 1], [], []>} : vector<8x8xbf16>, vector<8x8xbf16>, vector<8x8xf32> -> vector<8x8xf32>
    %164 = tpu.reciprocal %161 {approx = true} : vector<8x1xf32> -> vector<8x1xf32>
    %165 = vector.broadcast %164 : vector<8x1xf32> to vector<8x8xf32>
    %166 = arith.mulf %163, %165 : vector<8x8xf32>
    %167 = vector.extract_strided_slice %101 {offsets = [0, 24], sizes = [8, 8], strides = [1, 1]} : vector<8x96xf32> to vector<8x8xf32>
    %168 = arith.truncf %167 : vector<8x8xf32> to vector<8x8xbf16>
    %169 = vector.extract_strided_slice %101 {offsets = [0, 56], sizes = [8, 8], strides = [1, 1]} : vector<8x96xf32> to vector<8x8xf32>
    %170 = arith.truncf %169 : vector<8x8xf32> to vector<8x8xbf16>
    %171 = vector.extract_strided_slice %101 {offsets = [0, 88], sizes = [8, 8], strides = [1, 1]} : vector<8x96xf32> to vector<8x8xf32>
    %172 = arith.truncf %171 : vector<8x8xf32> to vector<8x8xbf16>
    %cst_44 = arith.constant dense<0.000000e+00> : vector<8x8xf32>
    %173 = tpu.matmul %168, %170, %cst_44 {dimension_numbers = #tpu.dot_dimension_numbers<[1], [1], [0], [0], [0, 0, 1, 0], [], []>} : vector<8x8xbf16>, vector<8x8xbf16>, vector<8x8xf32> -> vector<8x8xf32>
    %174 = vector.broadcast %103 : vector<1x8xf32> to vector<8x8xf32>
    %175 = arith.addf %173, %174 : vector<8x8xf32>
    %cst_45 = arith.constant dense<0xFF800000> : vector<8xf32>
    %176 = vector.multi_reduction <maximumf>, %175, %cst_45 [1] : vector<8x8xf32> to vector<8xf32>
    %177 = vector.shape_cast %176 : vector<8xf32> to vector<8x1xf32>
    %178 = vector.broadcast %177 : vector<8x1xf32> to vector<8x8xf32>
    %179 = arith.subf %175, %178 : vector<8x8xf32>
    %180 = math.exp %179 : vector<8x8xf32>
    %cst_46 = arith.constant dense<0.000000e+00> : vector<8xf32>
    %181 = vector.multi_reduction <add>, %180, %cst_46 [1] : vector<8x8xf32> to vector<8xf32>
    %182 = vector.shape_cast %181 : vector<8xf32> to vector<8x1xf32>
    %183 = arith.truncf %180 : vector<8x8xf32> to vector<8x8xbf16>
    %cst_47 = arith.constant dense<0.000000e+00> : vector<8x8xf32>
    %184 = tpu.matmul %183, %172, %cst_47 {dimension_numbers = #tpu.dot_dimension_numbers<[1], [0], [0], [1], [0, 0, 1, 1], [], []>} : vector<8x8xbf16>, vector<8x8xbf16>, vector<8x8xf32> -> vector<8x8xf32>
    %185 = tpu.reciprocal %182 {approx = true} : vector<8x1xf32> -> vector<8x1xf32>
    %186 = vector.broadcast %185 : vector<8x1xf32> to vector<8x8xf32>
    %187 = arith.mulf %184, %186 : vector<8x8xf32>
    %188 = tpu.concatenate %124, %145, %166, %187 in 1 : vector<8x8xf32>, vector<8x8xf32>, vector<8x8xf32>, vector<8x8xf32> -> vector<8x32xf32>
    %c1_48 = arith.constant 1 : index
    %c0_49 = arith.constant 0 : index
    %c0_50 = arith.constant 0 : index
    %189 = vector.load %arg6[%c1_48, %c0_49, %c0_50] : memref<2x8x32xf32, #tpu.memory_space<vmem>>, vector<1x8x32xf32>
    %190 = vector.shape_cast %189 : vector<1x8x32xf32> to vector<8x32xf32>
    %191 = vector.shape_cast %188 : vector<8x32xf32> to vector<1x8x32xf32>
    tpu.vector_store %arg6[%c1_48, %c0_49, %c0_50], %191 {strides = array<i32>} : memref<2x8x32xf32, #tpu.memory_space<vmem>>, vector<1x8x32xf32>,
    return
  }
  func.func @transform_0(%arg0: i32, %arg1: i32) -> (i32, i32, i32) {
    %c0_i32 = arith.constant 0 : i32
    %c0_i32_0 = arith.constant 0 : i32
    %c0_i32_1 = arith.constant 0 : i32
    return %arg0, %c0_i32, %c0_i32_0 : i32, i32, i32
  }
  func.func @transform_1(%arg0: i32, %arg1: i32) -> (i32, i32, i32) {
    %c0_i32 = arith.constant 0 : i32
    %c0_i32_0 = arith.constant 0 : i32
    %c0_i32_1 = arith.constant 0 : i32
    return %arg1, %c0_i32, %c0_i32_0 : i32, i32, i32
  }
  func.func @transform_2(%arg0: i32, %arg1: i32) -> (i32, i32, i32) {
    %c0_i32 = arith.constant 0 : i32
    %c0_i32_0 = arith.constant 0 : i32
    %c0_i32_1 = arith.constant 0 : i32
    return %arg1, %c0_i32, %c0_i32_0 : i32, i32, i32
  }
  func.func @transform_3(%arg0: i32, %arg1: i32) -> (i32, i32, i32) {
    %c0_i32 = arith.constant 0 : i32
    %c0_i32_0 = arith.constant 0 : i32
    %c0_i32_1 = arith.constant 0 : i32
    return %arg0, %c0_i32, %c0_i32_0 : i32, i32, i32
  }
  func.func @transform_4(%arg0: i32, %arg1: i32) -> (i32, i32, i32) {
    %c0_i32 = arith.constant 0 : i32
    %c0_i32_0 = arith.constant 0 : i32
    return %arg0, %c0_i32, %arg1 : i32, i32, i32
  }
}

</mosaic_0001>

<llo_original>
// kernel: tpu_custom_call.1
$region0: #{tpu_custom_call.1}
  #allocation0 [shape = 'u32[]', space=smem, size = 0x4, offset = 0x4, fixed_abs, tag = 'smem constant byte address 0x4 - core index']
  #allocation1 [shape = 'u32[144,128]{1,0:T(1,128)}', space=vmem, size = 0x12000, scoped, tag = 'internal scratch']
  %s0 = inlined_call_operand.hbm [shape: f32[2,8,32], index: 0, kind: input, shape index: {}]
  %s1 = inlined_call_operand.hbm [shape: bf16[1,32,96], index: 1, kind: input, shape index: {}]
  %s2 = inlined_call_operand.vmem [shape: f32[1,1,96], index: 2, kind: input, shape index: {}]
  %s3 = inlined_call_operand.vmem [shape: f32[2,1,8], index: 3, kind: input, shape index: {}]
  %s4 = inlined_call_operand.hbm [shape: f32[2,8,32], index: 4, kind: output, shape index: {}]
  %s5 = sld [smem:[#allocation0]]
  $region34: #{tpu_custom_call.1} parent=0
    _
  %s7 = ssub.s32 1, %s5
  %s8 = scalar_select 0, %s7, %s5
  $region1: #{tpu_custom_call.1} parent=0
    #allocation2 [shape = 'u8[8192]{0}', space=vmem, size = 0x2000, scoped, tag = 'input window, operand 0, single buffered']
    #allocation3 [shape = 's32[1]{0}', space=sflag, size = 0x4, scoped, tag = 'scoped memory for tpu_custom_call.1']
    #allocation4 [shape = 's32[1]{0}', space=sflag, size = 0x4, scoped, tag = 'scoped memory for tpu_custom_call.1']
    #allocation5 [shape = 'u8[8192]{0}', space=vmem, size = 0x2000, scoped, tag = 'input window, operand 1, single buffered']
    #allocation6 [shape = 's32[1]{0}', space=sflag, size = 0x4, scoped, tag = 'scoped memory for tpu_custom_call.1']
    #allocation7 [shape = 'u8[8192]{0}', space=vmem, size = 0x2000, scoped, tag = 'output window, operand 0, single buffered']
    %9 = vsyncpa [#allocation3], 0
    %10 = vsyncpa [#allocation6], 0
    %11 = vsyncpa [#allocation4], 0
    // Predicated region
    $region2: #{tpu_custom_call.1} parent=1 // pred_check
      _
    $region3: #{tpu_custom_call.1} parent=1 // pred_check_branch
      %13 = sbr.rel (0) target = $region5
    $region4: #{tpu_custom_call.1} parent=1 // pred_region
      %s15 = ssub.s32 256, 256
      %16 = vsyncadd [#allocation3], %s15
      %s17 = sshll.u32 [#allocation2], 4
      %s18 = int_to_ptr.vmem [resolvable:$true] %s17
      %23 = dma.hbm_to_vmem [thread:$0]  %s0, 256, %s18, [#allocation3], 128, 128, 8
    $region5: #{tpu_custom_call.1} parent=1 // pred_fallthru
      _
    // Predicated region
    $region6: #{tpu_custom_call.1} parent=1 // pred_check
      _
    $region7: #{tpu_custom_call.1} parent=1 // pred_check_branch
      %25 = sbr.rel (0) target = $region9
    $region8: #{tpu_custom_call.1} parent=1 // pred_region
      %s27 = ssub.s32 256, 256
      %28 = vsyncadd [#allocation6], %s27
      %s29 = sshll.u32 [#allocation5], 4
      %s30 = int_to_ptr.vmem [resolvable:$true] %s29
      %35 = dma.hbm_to_vmem [thread:$0]  %s1, 256, %s30, [#allocation6], 64, 64, 4
    $region9: #{tpu_custom_call.1} parent=1 // pred_fallthru
      _
    // Predicated region
    $region10: #{tpu_custom_call.1} parent=1 // pred_check
      _
    $region11: #{tpu_custom_call.1} parent=1 // pred_check_branch
      %37 = sbr.rel (0) target = $region13
    $region12: #{tpu_custom_call.1} parent=1 // pred_region
      _
    $region13: #{tpu_custom_call.1} parent=1 // pred_fallthru
      _
    // Predicated region
    $region14: #{tpu_custom_call.1} parent=1 // pred_check
      _
    $region15: #{tpu_custom_call.1} parent=1 // pred_check_branch
      %39 = sbr.rel (0) target = $region17
    $region16: #{tpu_custom_call.1} parent=1 // pred_region
      _
    $region17: #{tpu_custom_call.1} parent=1 // pred_fallthru
      _
    // Predicated region
    $region18: #{tpu_custom_call.1} parent=1 // pred_check
      _
    $region19: #{tpu_custom_call.1} parent=1 // pred_check_branch
      %41 = sbr.rel (0) target = $region21
    $region20: #{tpu_custom_call.1} parent=1 // pred_region
      %42 = dma.done [#allocation3], 256
    $region21: #{tpu_custom_call.1} parent=1 // pred_fallthru
      _
    // Predicated region
    $region22: #{tpu_custom_call.1} parent=1 // pred_check
      _
    $region23: #{tpu_custom_call.1} parent=1 // pred_check_branch
      %44 = sbr.rel (0) target = $region25
    $region24: #{tpu_custom_call.1} parent=1 // pred_region
      %45 = dma.done [#allocation6], 256
    $region25: #{tpu_custom_call.1} parent=1 // pred_fallthru
      _
    %v47 = vld [vmem:[#allocation2] sm:$0xff]
    %v48 = vld [vmem:[#allocation2 + $0x8] sm:$0xff]
    %v49 = vpack.c.bf16 %v48, %v47
    %v50 = vld [vmem:[#allocation5] sm:$0xf]
    %v51 = vld [vmem:[#allocation5 + $0x4] sm:$0xf]
    %v52 = vld [vmem:[#allocation5 + $0x8] sm:$0xf]
    %v53 = vld [vmem:[#allocation5 + $0xc] sm:$0xf]
    %v54 = vld [vmem:[%s2] sm:$0x1]
    %v56 = vlaneseq
    %v57 = vshrl.u32 %v56, 7
    %v58 = vsub.s32 0, %v57
    %v59 = vrot.slane %v54, %v58
    %v65 = vunpack.c.l.b16 %v50
    %v66 = vunpack.c.l.b16 %v51
    %v67 = vunpack.c.l.b16 %v52
    %v68 = vunpack.c.l.b16 %v53
    %v69 = vpack.c.b16 %v66, %v65
    %v70 = vpack.c.b16 %v68, %v67
    %vm73 = vcmask 261120
    %v75 = vsel %vm73, %v49, 0
    %77 = vmatprep.subr.bf16.mxu0 0
    %78 = vmatpush1.bf16.msra.mxu0 %v69
    %79 = vmatprep.subr.bf16.mxu0 0
    %80 = vmatpush1.bf16.msra.mxu0 %v70
    %81 = vmatprep.subr.bf16.mxu0 0
    %82 = vmatpush1.bf16.msra.mxu0 0
    %83 = vmatprep.subr.bf16.mxu0 0
    %84 = vmatpush1.bf16.msra.mxu0 0
    %85 = vmatprep.subr.bf16.mxu0 0
    %86 = vmatpush1.bf16.msra.mxu0 0
    %87 = vmatprep.subr.bf16.mxu0 0
    %88 = vmatpush1.bf16.msra.mxu0 0
    %89 = vmatprep.subr.bf16.mxu0 0
    %90 = vmatpush1.bf16.msra.mxu0 0
    %91 = vmatprep.subr.bf16.mxu0 0
    %92 = vmatpush1.bf16.msra.mxu0 0
    %93 = vmatprep.subr.bf16.mxu0 0
    %94 = vmatpush1.bf16.msra.mxu0 0
    %95 = vmatprep.subr.bf16.mxu0 0
    %96 = vmatpush1.bf16.msra.mxu0 0
    %97 = vmatprep.subr.bf16.mxu0 0
    %98 = vmatpush1.bf16.msra.mxu0 0
    %99 = vmatprep.subr.bf16.mxu0 0
    %100 = vmatpush1.bf16.msra.mxu0 0
    %101 = vmatprep.subr.bf16.mxu0 0
    %102 = vmatpush1.bf16.msra.mxu0 0
    %103 = vmatprep.subr.bf16.mxu0 0
    %104 = vmatpush1.bf16.msra.mxu0 0
    %105 = vmatprep.subr.bf16.mxu0 0
    %106 = vmatpush1.bf16.msra.mxu0 0
    %107 = vmatprep.subr.bf16.mxu0 0
    %108 = vmatpush1.bf16.msra.mxu0 0
    %109 = vmatprep.mubr.bf16.mxu0 0
    %110 = vmatmul.mubr.bf16.gmra.mrb[0].mxu0 %v75
    %v111 = vpop.f32.mrb[0].mxu0
    %v112 = vadd.f32 %v59, %v111
    %v113 = vpop.f32.mrb[0].mxu0
    %v114 = vpop.f32.mrb[0].mxu0
    %v115 = vadd.f32 %v59, %v114
    %v116 = vpop.f32.mrb[0].mxu0
    %117 = vdwg.mxu0
    %v118 = vld [vmem:[%s3] sm:$0x1]
    %v119 = vpack.c.bf16 %v112, %v112
    %v121 = vlaneseq
    %v122 = vshrl.u32 %v121, 7
    %v123 = vsub.s32 0, %v122
    %v124 = vrot.slane %v118, %v123
    %127 = vrot.lane.b32.xlu0 %v119, 96
    %v128 = vpop.permute.xlu0 %127
    %vm129 = vcmask 64512
    %v131 = vsel %vm129, %v119, 0
    %v134 = vsel %vm129, %v128, 0
    %136 = vmatprep.subr.bf16.mxu0 0
    %137 = vmatpush1.bf16.xpose.msra.mxu0 %v134
    %138 = vmatprep.subr.bf16.mxu0 0
    %139 = vmatpush1.bf16.xpose.msra.mxu0 0
    %140 = vmatprep.subr.bf16.mxu0 0
    %141 = vmatpush1.bf16.xpose.msra.mxu0 0
    %142 = vmatprep.subr.bf16.mxu0 0
    %143 = vmatpush1.bf16.xpose.msra.mxu0 0
    %144 = vmatprep.subr.bf16.mxu0 0
    %145 = vmatpush1.bf16.xpose.msra.mxu0 0
    %146 = vmatprep.subr.bf16.mxu0 0
    %147 = vmatpush1.bf16.xpose.msra.mxu0 0
    %148 = vmatprep.subr.bf16.mxu0 0
    %149 = vmatpush1.bf16.xpose.msra.mxu0 0
    %150 = vmatprep.subr.bf16.mxu0 0
    %151 = vmatpush1.bf16.xpose.msra.mxu0 0
    %152 = vmatprep.subr.bf16.mxu0 0
    %153 = vmatpush1.bf16.xpose.msra.mxu0 0
    %154 = vmatprep.subr.bf16.mxu0 0
    %155 = vmatpush1.bf16.xpose.msra.mxu0 0
    %156 = vmatprep.subr.bf16.mxu0 0
    %157 = vmatpush1.bf16.xpose.msra.mxu0 0
    %158 = vmatprep.subr.bf16.mxu0 0
    %159 = vmatpush1.bf16.xpose.msra.mxu0 0
    %160 = vmatprep.subr.bf16.mxu0 0
    %161 = vmatpush1.bf16.xpose.msra.mxu0 0
    %162 = vmatprep.subr.bf16.mxu0 0
    %163 = vmatpush1.bf16.xpose.msra.mxu0 0
    %164 = vmatprep.subr.bf16.mxu0 0
    %165 = vmatpush1.bf16.xpose.msra.mxu0 0
    %166 = vmatprep.subr.bf16.mxu0 0
    %167 = vmatpush1.bf16.xpose.msra.mxu0 0
    %168 = vmatprep.mubr.bf16.mxu0 0
    %169 = vmatmul.mubr.bf16.gmra.mrb[0].mxu0 %v131
    %v170 = vpop.f32.mrb[0].mxu0
    %v171 = vadd.f32 %v124, %v170
    %v172 = vpop.f32.mrb[0].mxu0
    %v173 = vpop.f32.mrb[0].mxu0
    %v174 = vpop.f32.mrb[0].mxu0
    %175 = vdwg.mxu0
    %v176 = vsel %vm129, %v171, -inf
    %177 = vmax.xlane.f32.xlu0 %v176
    %v178 = vpop.xlane.xlu0 %177
    %v179 = vsub.f32 %v171, %v178
    %v180 = vmul.f32 %v179, 1.442695
    %v181 = vpow.pop %v180
    %v182 = vsel %vm129, %v181, 0.0
    %183 = vadd.xlane.f32.xlu0 %v182
    %v184 = vpop.xlane.xlu0 %183
    %v185 = vpack.c.bf16 %v181, %v181
    %186 = vrot.lane.b32.xlu0 %v119, 64
    %v187 = vpop.permute.xlu0 %186
    %v189 = vsel %vm129, %v185, 0
    %vm191 = vcmask 1043456
    %v193 = vsel %vm191, %v187, 0
    %195 = vmatprep.subr.bf16.mxu0 0
    %196 = vmatpush1.bf16.msra.mxu0 %v193
    %197 = vmatprep.subr.bf16.mxu0 0
    %198 = vmatpush1.bf16.msra.mxu0 0
    %199 = vmatprep.subr.bf16.mxu0 0
    %200 = vmatpush1.bf16.msra.mxu0 0
    %201 = vmatprep.subr.bf16.mxu0 0
    %202 = vmatpush1.bf16.msra.mxu0 0
    %203 = vmatprep.subr.bf16.mxu0 0
    %204 = vmatpush1.bf16.msra.mxu0 0
    %205 = vmatprep.subr.bf16.mxu0 0
    %206 = vmatpush1.bf16.msra.mxu0 0
    %207 = vmatprep.subr.bf16.mxu0 0
    %208 = vmatpush1.bf16.msra.mxu0 0
    %209 = vmatprep.subr.bf16.mxu0 0
    %210 = vmatpush1.bf16.msra.mxu0 0
    %211 = vmatprep.subr.bf16.mxu0 0
    %212 = vmatpush1.bf16.msra.mxu0 0
    %213 = vmatprep.subr.bf16.mxu0 0
    %214 = vmatpush1.bf16.msra.mxu0 0
    %215 = vmatprep.subr.bf16.mxu0 0
    %216 = vmatpush1.bf16.msra.mxu0 0
    %217 = vmatprep.subr.bf16.mxu0 0
    %218 = vmatpush1.bf16.msra.mxu0 0
    %219 = vmatprep.subr.bf16.mxu0 0
    %220 = vmatpush1.bf16.msra.mxu0 0
    %221 = vmatprep.subr.bf16.mxu0 0
    %222 = vmatpush1.bf16.msra.mxu0 0
    %223 = vmatprep.subr.bf16.mxu0 0
    %224 = vmatpush1.bf16.msra.mxu0 0
    %225 = vmatprep.subr.bf16.mxu0 0
    %226 = vmatpush1.bf16.msra.mxu0 0
    %227 = vmatprep.mubr.bf16.mxu0 0
    %228 = vmatmul.mubr.bf16.gmra.mrb[0].mxu0 %v189
    %v229 = vpop.f32.mrb[0].mxu0
    %v230 = vadd.f32 0.0, %v229
    %v231 = vpop.f32.mrb[0].mxu0
    %v232 = vpop.f32.mrb[0].mxu0
    %v233 = vpop.f32.mrb[0].mxu0
    %234 = vdwg.mxu0
    %v235 = vrcp.pop %v184
    %v236 = vmul.f32 %v230, %v235
    %237 = vrot.lane.b32.xlu0 %v119, 120
    %v238 = vpop.permute.xlu0 %237
    %239 = vrot.lane.b32.xlu0 %v119, 88
    %v240 = vpop.permute.xlu0 %239
    %v242 = vsel %vm129, %v238, 0
    %v245 = vsel %vm129, %v240, 0
    %247 = vmatprep.subr.bf16.mxu0 0
    %248 = vmatpush1.bf16.xpose.msra.mxu0 %v245
    %249 = vmatprep.subr.bf16.mxu0 0
    %250 = vmatpush1.bf16.xpose.msra.mxu0 0
    %251 = vmatprep.subr.bf16.mxu0 0
    %252 = vmatpush1.bf16.xpose.msra.mxu0 0
    %253 = vmatprep.subr.bf16.mxu0 0
    %254 = vmatpush1.bf16.xpose.msra.mxu0 0
    %255 = vmatprep.subr.bf16.mxu0 0
    %256 = vmatpush1.bf16.xpose.msra.mxu0 0
    %257 = vmatprep.subr.bf16.mxu0 0
    %258 = vmatpush1.bf16.xpose.msra.mxu0 0
    %259 = vmatprep.subr.bf16.mxu0 0
    %260 = vmatpush1.bf16.xpose.msra.mxu0 0
    %261 = vmatprep.subr.bf16.mxu0 0
    %262 = vmatpush1.bf16.xpose.msra.mxu0 0
    %263 = vmatprep.subr.bf16.mxu0 0
    %264 = vmatpush1.bf16.xpose.msra.mxu0 0
    %265 = vmatprep.subr.bf16.mxu0 0
    %266 = vmatpush1.bf16.xpose.msra.mxu0 0
    %267 = vmatprep.subr.bf16.mxu0 0
    %268 = vmatpush1.bf16.xpose.msra.mxu0 0
    %269 = vmatprep.subr.bf16.mxu0 0
    %270 = vmatpush1.bf16.xpose.msra.mxu0 0
    %271 = vmatprep.subr.bf16.mxu0 0
    %272 = vmatpush1.bf16.xpose.msra.mxu0 0
    %273 = vmatprep.subr.bf16.mxu0 0
    %274 = vmatpush1.bf16.xpose.msra.mxu0 0
    %275 = vmatprep.subr.bf16.mxu0 0
    %276 = vmatpush1.bf16.xpose.msra.mxu0 0
    %277 = vmatprep.subr.bf16.mxu0 0
    %278 = vmatpush1.bf16.xpose.msra.mxu0 0
    %279 = vmatprep.mubr.bf16.mxu0 0
    %280 = vmatmul.mubr.bf16.gmra.mrb[0].mxu0 %v242
    %v281 = vpop.f32.mrb[0].mxu0
    %v282 = vadd.f32 %v124, %v281
    %v283 = vpop.f32.mrb[0].mxu0
    %v284 = vpop.f32.mrb[0].mxu0
    %v285 = vpop.f32.mrb[0].mxu0
    %286 = vdwg.mxu0
    %v287 = vsel %vm129, %v282, -inf
    %288 = vmax.xlane.f32.xlu0 %v287
    %v289 = vpop.xlane.xlu0 %288
    %v290 = vsub.f32 %v282, %v289
    %v291 = vmul.f32 %v290, 1.442695
    %v292 = vpow.pop %v291
    %v293 = vsel %vm129, %v292, 0.0
    %294 = vadd.xlane.f32.xlu0 %v293
    %v295 = vpop.xlane.xlu0 %294
    %v296 = vpack.c.bf16 %v292, %v292
    %297 = vrot.lane.b32.xlu0 %v119, 56
    %v298 = vpop.permute.xlu0 %297
    %v300 = vsel %vm129, %v296, 0
    %v303 = vsel %vm191, %v298, 0
    %305 = vmatprep.subr.bf16.mxu0 0
    %306 = vmatpush1.bf16.msra.mxu0 %v303
    %307 = vmatprep.subr.bf16.mxu0 0
    %308 = vmatpush1.bf16.msra.mxu0 0
    %309 = vmatprep.subr.bf16.mxu0 0
    %310 = vmatpush1.bf16.msra.mxu0 0
    %311 = vmatprep.subr.bf16.mxu0 0
    %312 = vmatpush1.bf16.msra.mxu0 0
    %313 = vmatprep.subr.bf16.mxu0 0
    %314 = vmatpush1.bf16.msra.mxu0 0
    %315 = vmatprep.subr.bf16.mxu0 0
    %316 = vmatpush1.bf16.msra.mxu0 0
    %317 = vmatprep.subr.bf16.mxu0 0
    %318 = vmatpush1.bf16.msra.mxu0 0
    %319 = vmatprep.subr.bf16.mxu0 0
    %320 = vmatpush1.bf16.msra.mxu0 0
    %321 = vmatprep.subr.bf16.mxu0 0
    %322 = vmatpush1.bf16.msra.mxu0 0
    %323 = vmatprep.subr.bf16.mxu0 0
    %324 = vmatpush1.bf16.msra.mxu0 0
    %325 = vmatprep.subr.bf16.mxu0 0
    %326 = vmatpush1.bf16.msra.mxu0 0
    %327 = vmatprep.subr.bf16.mxu0 0
    %328 = vmatpush1.bf16.msra.mxu0 0
    %329 = vmatprep.subr.bf16.mxu0 0
    %330 = vmatpush1.bf16.msra.mxu0 0
    %331 = vmatprep.subr.bf16.mxu0 0
    %332 = vmatpush1.bf16.msra.mxu0 0
    %333 = vmatprep.subr.bf16.mxu0 0
    %334 = vmatpush1.bf16.msra.mxu0 0
    %335 = vmatprep.subr.bf16.mxu0 0
    %336 = vmatpush1.bf16.msra.mxu0 0
    %337 = vmatprep.mubr.bf16.mxu0 0
    %338 = vmatmul.mubr.bf16.gmra.mrb[0].mxu0 %v300
    %v339 = vpop.f32.mrb[0].mxu0
    %v340 = vadd.f32 0.0, %v339
    %v341 = vpop.f32.mrb[0].mxu0
    %v342 = vpop.f32.mrb[0].mxu0
    %v343 = vpop.f32.mrb[0].mxu0
    %344 = vdwg.mxu0
    %v345 = vrcp.pop %v295
    %v346 = vmul.f32 %v340, %v345
    %347 = vrot.lane.b32.xlu0 %v119, 112
    %v348 = vpop.permute.xlu0 %347
    %349 = vrot.lane.b32.xlu0 %v119, 80
    %v350 = vpop.permute.xlu0 %349
    %v352 = vsel %vm129, %v348, 0
    %v355 = vsel %vm129, %v350, 0
    %357 = vmatprep.subr.bf16.mxu0 0
    %358 = vmatpush1.bf16.xpose.msra.mxu0 %v355
    %359 = vmatprep.subr.bf16.mxu0 0
    %360 = vmatpush1.bf16.xpose.msra.mxu0 0
    %361 = vmatprep.subr.bf16.mxu0 0
    %362 = vmatpush1.bf16.xpose.msra.mxu0 0
    %363 = vmatprep.subr.bf16.mxu0 0
    %364 = vmatpush1.bf16.xpose.msra.mxu0 0
    %365 = vmatprep.subr.bf16.mxu0 0
    %366 = vmatpush1.bf16.xpose.msra.mxu0 0
    %367 = vmatprep.subr.bf16.mxu0 0
    %368 = vmatpush1.bf16.xpose.msra.mxu0 0
    %369 = vmatprep.subr.bf16.mxu0 0
    %370 = vmatpush1.bf16.xpose.msra.mxu0 0
    %371 = vmatprep.subr.bf16.mxu0 0
    %372 = vmatpush1.bf16.xpose.msra.mxu0 0
    %373 = vmatprep.subr.bf16.mxu0 0
    %374 = vmatpush1.bf16.xpose.msra.mxu0 0
    %375 = vmatprep.subr.bf16.mxu0 0
    %376 = vmatpush1.bf16.xpose.msra.mxu0 0
    %377 = vmatprep.subr.bf16.mxu0 0
    %378 = vmatpush1.bf16.xpose.msra.mxu0 0
    %379 = vmatprep.subr.bf16.mxu0 0
    %380 = vmatpush1.bf16.xpose.msra.mxu0 0
    %381 = vmatprep.subr.bf16.mxu0 0
    %382 = vmatpush1.bf16.xpose.msra.mxu0 0
    %383 = vmatprep.subr.bf16.mxu0 0
    %384 = vmatpush1.bf16.xpose.msra.mxu0 0
    %385 = vmatprep.subr.bf16.mxu0 0
    %386 = vmatpush1.bf16.xpose.msra.mxu0 0
    %387 = vmatprep.subr.bf16.mxu0 0
    %388 = vmatpush1.bf16.xpose.msra.mxu0 0
    %389 = vmatprep.mubr.bf16.mxu0 0
    %390 = vmatmul.mubr.bf16.gmra.mrb[0].mxu0 %v352
    %v391 = vpop.f32.mrb[0].mxu0
    %v392 = vadd.f32 %v124, %v391
    %v393 = vpop.f32.mrb[0].mxu0
    %v394 = vpop.f32.mrb[0].mxu0
    %v395 = vpop.f32.mrb[0].mxu0
    %396 = vdwg.mxu0
    %v397 = vsel %vm129, %v392, -inf
    %398 = vmax.xlane.f32.xlu0 %v397
    %v399 = vpop.xlane.xlu0 %398
    %v400 = vsub.f32 %v392, %v399
    %v401 = vmul.f32 %v400, 1.442695
    %v402 = vpow.pop %v401
    %v403 = vsel %vm129, %v402, 0.0
    %404 = vadd.xlane.f32.xlu0 %v403
    %v405 = vpop.xlane.xlu0 %404
    %v406 = vpack.c.bf16 %v402, %v402
    %407 = vrot.lane.b32.xlu0 %v119, 48
    %v408 = vpop.permute.xlu0 %407
    %v410 = vsel %vm129, %v406, 0
    %v413 = vsel %vm191, %v408, 0
    %415 = vmatprep.subr.bf16.mxu0 0
    %416 = vmatpush1.bf16.msra.mxu0 %v413
    %417 = vmatprep.subr.bf16.mxu0 0
    %418 = vmatpush1.bf16.msra.mxu0 0
    %419 = vmatprep.subr.bf16.mxu0 0
    %420 = vmatpush1.bf16.msra.mxu0 0
    %421 = vmatprep.subr.bf16.mxu0 0
    %422 = vmatpush1.bf16.msra.mxu0 0
    %423 = vmatprep.subr.bf16.mxu0 0
    %424 = vmatpush1.bf16.msra.mxu0 0
    %425 = vmatprep.subr.bf16.mxu0 0
    %426 = vmatpush1.bf16.msra.mxu0 0
    %427 = vmatprep.subr.bf16.mxu0 0
    %428 = vmatpush1.bf16.msra.mxu0 0
    %429 = vmatprep.subr.bf16.mxu0 0
    %430 = vmatpush1.bf16.msra.mxu0 0
    %431 = vmatprep.subr.bf16.mxu0 0
    %432 = vmatpush1.bf16.msra.mxu0 0
    %433 = vmatprep.subr.bf16.mxu0 0
    %434 = vmatpush1.bf16.msra.mxu0 0
    %435 = vmatprep.subr.bf16.mxu0 0
    %436 = vmatpush1.bf16.msra.mxu0 0
    %437 = vmatprep.subr.bf16.mxu0 0
    %438 = vmatpush1.bf16.msra.mxu0 0
    %439 = vmatprep.subr.bf16.mxu0 0
    %440 = vmatpush1.bf16.msra.mxu0 0
    %441 = vmatprep.subr.bf16.mxu0 0
    %442 = vmatpush1.bf16.msra.mxu0 0
    %443 = vmatprep.subr.bf16.mxu0 0
    %444 = vmatpush1.bf16.msra.mxu0 0
    %445 = vmatprep.subr.bf16.mxu0 0
    %446 = vmatpush1.bf16.msra.mxu0 0
    %447 = vmatprep.mubr.bf16.mxu0 0
    %448 = vmatmul.mubr.bf16.gmra.mrb[0].mxu0 %v410
    %v449 = vpop.f32.mrb[0].mxu0
    %v450 = vadd.f32 0.0, %v449
    %v451 = vpop.f32.mrb[0].mxu0
    %v452 = vpop.f32.mrb[0].mxu0
    %v453 = vpop.f32.mrb[0].mxu0
    %454 = vdwg.mxu0
    %v455 = vrcp.pop %v405
    %v456 = vmul.f32 %v450, %v455
    %457 = vrot.lane.b32.xlu0 %v119, 104
    %v458 = vpop.permute.xlu0 %457
    %459 = vrot.lane.b32.xlu0 %v119, 72
    %v460 = vpop.permute.xlu0 %459
    %v462 = vsel %vm129, %v458, 0
    %v465 = vsel %vm129, %v460, 0
    %467 = vmatprep.subr.bf16.mxu0 0
    %468 = vmatpush1.bf16.xpose.msra.mxu0 %v465
    %469 = vmatprep.subr.bf16.mxu0 0
    %470 = vmatpush1.bf16.xpose.msra.mxu0 0
    %471 = vmatprep.subr.bf16.mxu0 0
    %472 = vmatpush1.bf16.xpose.msra.mxu0 0
    %473 = vmatprep.subr.bf16.mxu0 0
    %474 = vmatpush1.bf16.xpose.msra.mxu0 0
    %475 = vmatprep.subr.bf16.mxu0 0
    %476 = vmatpush1.bf16.xpose.msra.mxu0 0
    %477 = vmatprep.subr.bf16.mxu0 0
    %478 = vmatpush1.bf16.xpose.msra.mxu0 0
    %479 = vmatprep.subr.bf16.mxu0 0
    %480 = vmatpush1.bf16.xpose.msra.mxu0 0
    %481 = vmatprep.subr.bf16.mxu0 0
    %482 = vmatpush1.bf16.xpose.msra.mxu0 0
    %483 = vmatprep.subr.bf16.mxu0 0
    %484 = vmatpush1.bf16.xpose.msra.mxu0 0
    %485 = vmatprep.subr.bf16.mxu0 0
    %486 = vmatpush1.bf16.xpose.msra.mxu0 0
    %487 = vmatprep.subr.bf16.mxu0 0
    %488 = vmatpush1.bf16.xpose.msra.mxu0 0
    %489 = vmatprep.subr.bf16.mxu0 0
    %490 = vmatpush1.bf16.xpose.msra.mxu0 0
    %491 = vmatprep.subr.bf16.mxu0 0
    %492 = vmatpush1.bf16.xpose.msra.mxu0 0
    %493 = vmatprep.subr.bf16.mxu0 0
    %494 = vmatpush1.bf16.xpose.msra.mxu0 0
    %495 = vmatprep.subr.bf16.mxu0 0
    %496 = vmatpush1.bf16.xpose.msra.mxu0 0
    %497 = vmatprep.subr.bf16.mxu0 0
    %498 = vmatpush1.bf16.xpose.msra.mxu0 0
    %499 = vmatprep.mubr.bf16.mxu0 0
    %500 = vmatmul.mubr.bf16.gmra.mrb[0].mxu0 %v462
    %v501 = vpop.f32.mrb[0].mxu0
    %v502 = vadd.f32 %v124, %v501
    %v503 = vpop.f32.mrb[0].mxu0
    %v504 = vpop.f32.mrb[0].mxu0
    %v505 = vpop.f32.mrb[0].mxu0
    %506 = vdwg.mxu0
    %v507 = vsel %vm129, %v502, -inf
    %508 = vmax.xlane.f32.xlu0 %v507
    %v509 = vpop.xlane.xlu0 %508
    %v510 = vsub.f32 %v502, %v509
    %v511 = vmul.f32 %v510, 1.442695
    %v512 = vpow.pop %v511
    %v513 = vsel %vm129, %v512, 0.0
    %514 = vadd.xlane.f32.xlu0 %v513
    %v515 = vpop.xlane.xlu0 %514
    %v516 = vpack.c.bf16 %v512, %v512
    %517 = vrot.lane.b32.xlu0 %v119, 40
    %v518 = vpop.permute.xlu0 %517
    %v520 = vsel %vm129, %v516, 0
    %v523 = vsel %vm191, %v518, 0
    %525 = vmatprep.subr.bf16.mxu0 0
    %526 = vmatpush1.bf16.msra.mxu0 %v523
    %527 = vmatprep.subr.bf16.mxu0 0
    %528 = vmatpush1.bf16.msra.mxu0 0
    %529 = vmatprep.subr.bf16.mxu0 0
    %530 = vmatpush1.bf16.msra.mxu0 0
    %531 = vmatprep.subr.bf16.mxu0 0
    %532 = vmatpush1.bf16.msra.mxu0 0
    %533 = vmatprep.subr.bf16.mxu0 0
    %534 = vmatpush1.bf16.msra.mxu0 0
    %535 = vmatprep.subr.bf16.mxu0 0
    %536 = vmatpush1.bf16.msra.mxu0 0
    %537 = vmatprep.subr.bf16.mxu0 0
    %538 = vmatpush1.bf16.msra.mxu0 0
    %539 = vmatprep.subr.bf16.mxu0 0
    %540 = vmatpush1.bf16.msra.mxu0 0
    %541 = vmatprep.subr.bf16.mxu0 0
    %542 = vmatpush1.bf16.msra.mxu0 0
    %543 = vmatprep.subr.bf16.mxu0 0
    %544 = vmatpush1.bf16.msra.mxu0 0
    %545 = vmatprep.subr.bf16.mxu0 0
    %546 = vmatpush1.bf16.msra.mxu0 0
    %547 = vmatprep.subr.bf16.mxu0 0
    %548 = vmatpush1.bf16.msra.mxu0 0
    %549 = vmatprep.subr.bf16.mxu0 0
    %550 = vmatpush1.bf16.msra.mxu0 0
    %551 = vmatprep.subr.bf16.mxu0 0
    %552 = vmatpush1.bf16.msra.mxu0 0
    %553 = vmatprep.subr.bf16.mxu0 0
    %554 = vmatpush1.bf16.msra.mxu0 0
    %555 = vmatprep.subr.bf16.mxu0 0
    %556 = vmatpush1.bf16.msra.mxu0 0
    %557 = vmatprep.mubr.bf16.mxu0 0
    %558 = vmatmul.mubr.bf16.gmra.mrb[0].mxu0 %v520
    %v559 = vpop.f32.mrb[0].mxu0
    %v560 = vadd.f32 0.0, %v559
    %v561 = vpop.f32.mrb[0].mxu0
    %v562 = vpop.f32.mrb[0].mxu0
    %v563 = vpop.f32.mrb[0].mxu0
    %564 = vdwg.mxu0
    %v565 = vrcp.pop %v515
    %v566 = vmul.f32 %v560, %v565
    %568 = vrot.lane.b32.xlu0 %v346, 8
    %v569 = vpop.permute.xlu0 %568
    %572 = vrot.lane.b32.xlu0 %v456, 16
    %v573 = vpop.permute.xlu0 %572
    %576 = vrot.lane.b32.xlu0 %v566, 24
    %v577 = vpop.permute.xlu0 %576
    %v579 = vsel %vm129, %v236, %v569
    %vm580 = vcmask 130048
    %v581 = vsel %vm580, %v579, %v573
    %vm582 = vcmask 195584
    %v583 = vsel %vm582, %v581, %v577
    %584 = vst.msk [vmem:[#allocation7] sm:$0xff] %vm73, %v583
    %s585 = scalar_lea.vmem %s3, 1
    %v586 = vld [vmem:[%s585] sm:$0x1]
    %v587 = vpack.c.bf16 %v115, %v115
    %v589 = vlaneseq
    %v590 = vshrl.u32 %v589, 7
    %v591 = vsub.s32 0, %v590
    %v592 = vrot.slane %v586, %v591
    %595 = vrot.lane.b32.xlu0 %v587, 96
    %v596 = vpop.permute.xlu0 %595
    %v598 = vsel %vm129, %v587, 0
    %v601 = vsel %vm129, %v596, 0
    %603 = vmatprep.subr.bf16.mxu0 0
    %604 = vmatpush1.bf16.xpose.msra.mxu0 %v601
    %605 = vmatprep.subr.bf16.mxu0 0
    %606 = vmatpush1.bf16.xpose.msra.mxu0 0
    %607 = vmatprep.subr.bf16.mxu0 0
    %608 = vmatpush1.bf16.xpose.msra.mxu0 0
    %609 = vmatprep.subr.bf16.mxu0 0
    %610 = vmatpush1.bf16.xpose.msra.mxu0 0
    %611 = vmatprep.subr.bf16.mxu0 0
    %612 = vmatpush1.bf16.xpose.msra.mxu0 0
    %613 = vmatprep.subr.bf16.mxu0 0
    %614 = vmatpush1.bf16.xpose.msra.mxu0 0
    %615 = vmatprep.subr.bf16.mxu0 0
    %616 = vmatpush1.bf16.xpose.msra.mxu0 0
    %617 = vmatprep.subr.bf16.mxu0 0
    %618 = vmatpush1.bf16.xpose.msra.mxu0 0
    %619 = vmatprep.subr.bf16.mxu0 0
    %620 = vmatpush1.bf16.xpose.msra.mxu0 0
    %621 = vmatprep.subr.bf16.mxu0 0
    %622 = vmatpush1.bf16.xpose.msra.mxu0 0
    %623 = vmatprep.subr.bf16.mxu0 0
    %624 = vmatpush1.bf16.xpose.msra.mxu0 0
    %625 = vmatprep.subr.bf16.mxu0 0
    %626 = vmatpush1.bf16.xpose.msra.mxu0 0
    %627 = vmatprep.subr.bf16.mxu0 0
    %628 = vmatpush1.bf16.xpose.msra.mxu0 0
    %629 = vmatprep.subr.bf16.mxu0 0
    %630 = vmatpush1.bf16.xpose.msra.mxu0 0
    %631 = vmatprep.subr.bf16.mxu0 0
    %632 = vmatpush1.bf16.xpose.msra.mxu0 0
    %633 = vmatprep.subr.bf16.mxu0 0
    %634 = vmatpush1.bf16.xpose.msra.mxu0 0
    %635 = vmatprep.mubr.bf16.mxu0 0
    %636 = vmatmul.mubr.bf16.gmra.mrb[0].mxu0 %v598
    %v637 = vpop.f32.mrb[0].mxu0
    %v638 = vadd.f32 %v592, %v637
    %v639 = vpop.f32.mrb[0].mxu0
    %v640 = vpop.f32.mrb[0].mxu0
    %v641 = vpop.f32.mrb[0].mxu0
    %642 = vdwg.mxu0
    %v643 = vsel %vm129, %v638, -inf
    %644 = vmax.xlane.f32.xlu0 %v643
    %v645 = vpop.xlane.xlu0 %644
    %v646 = vsub.f32 %v638, %v645
    %v647 = vmul.f32 %v646, 1.442695
    %v648 = vpow.pop %v647
    %v649 = vsel %vm129, %v648, 0.0
    %650 = vadd.xlane.f32.xlu0 %v649
    %v651 = vpop.xlane.xlu0 %650
    %v652 = vpack.c.bf16 %v648, %v648
    %653 = vrot.lane.b32.xlu0 %v587, 64
    %v654 = vpop.permute.xlu0 %653
    %v656 = vsel %vm129, %v652, 0
    %v659 = vsel %vm191, %v654, 0
    %661 = vmatprep.subr.bf16.mxu0 0
    %662 = vmatpush1.bf16.msra.mxu0 %v659
    %663 = vmatprep.subr.bf16.mxu0 0
    %664 = vmatpush1.bf16.msra.mxu0 0
    %665 = vmatprep.subr.bf16.mxu0 0
    %666 = vmatpush1.bf16.msra.mxu0 0
    %667 = vmatprep.subr.bf16.mxu0 0
    %668 = vmatpush1.bf16.msra.mxu0 0
    %669 = vmatprep.subr.bf16.mxu0 0
    %670 = vmatpush1.bf16.msra.mxu0 0
    %671 = vmatprep.subr.bf16.mxu0 0
    %672 = vmatpush1.bf16.msra.mxu0 0
    %673 = vmatprep.subr.bf16.mxu0 0
    %674 = vmatpush1.bf16.msra.mxu0 0
    %675 = vmatprep.subr.bf16.mxu0 0
    %676 = vmatpush1.bf16.msra.mxu0 0
    %677 = vmatprep.subr.bf16.mxu0 0
    %678 = vmatpush1.bf16.msra.mxu0 0
    %679 = vmatprep.subr.bf16.mxu0 0
    %680 = vmatpush1.bf16.msra.mxu0 0
    %681 = vmatprep.subr.bf16.mxu0 0
    %682 = vmatpush1.bf16.msra.mxu0 0
    %683 = vmatprep.subr.bf16.mxu0 0
    %684 = vmatpush1.bf16.msra.mxu0 0
    %685 = vmatprep.subr.bf16.mxu0 0
    %686 = vmatpush1.bf16.msra.mxu0 0
    %687 = vmatprep.subr.bf16.mxu0 0
    %688 = vmatpush1.bf16.msra.mxu0 0
    %689 = vmatprep.subr.bf16.mxu0 0
    %690 = vmatpush1.bf16.msra.mxu0 0
    %691 = vmatprep.subr.bf16.mxu0 0
    %692 = vmatpush1.bf16.msra.mxu0 0
    %693 = vmatprep.mubr.bf16.mxu0 0
    %694 = vmatmul.mubr.bf16.gmra.mrb[0].mxu0 %v656
    %v695 = vpop.f32.mrb[0].mxu0
    %v696 = vadd.f32 0.0, %v695
    %v697 = vpop.f32.mrb[0].mxu0
    %v698 = vpop.f32.mrb[0].mxu0
    %v699 = vpop.f32.mrb[0].mxu0
    %700 = vdwg.mxu0
    %v701 = vrcp.pop %v651
    %v702 = vmul.f32 %v696, %v701
    %703 = vrot.lane.b32.xlu0 %v587, 120
    %v704 = vpop.permute.xlu0 %703
    %705 = vrot.lane.b32.xlu0 %v587, 88
    %v706 = vpop.permute.xlu0 %705
    %v708 = vsel %vm129, %v704, 0
    %v711 = vsel %vm129, %v706, 0
    %713 = vmatprep.subr.bf16.mxu0 0
    %714 = vmatpush1.bf16.xpose.msra.mxu0 %v711
    %715 = vmatprep.subr.bf16.mxu0 0
    %716 = vmatpush1.bf16.xpose.msra.mxu0 0
    %717 = vmatprep.subr.bf16.mxu0 0
    %718 = vmatpush1.bf16.xpose.msra.mxu0 0
    %719 = vmatprep.subr.bf16.mxu0 0
    %720 = vmatpush1.bf16.xpose.msra.mxu0 0
    %721 = vmatprep.subr.bf16.mxu0 0
    %722 = vmatpush1.bf16.xpose.msra.mxu0 0
    %723 = vmatprep.subr.bf16.mxu0 0
    %724 = vmatpush1.bf16.xpose.msra.mxu0 0
    %725 = vmatprep.subr.bf16.mxu0 0
    %726 = vmatpush1.bf16.xpose.msra.mxu0 0
    %727 = vmatprep.subr.bf16.mxu0 0
    %728 = vmatpush1.bf16.xpose.msra.mxu0 0
    %729 = vmatprep.subr.bf16.mxu0 0
    %730 = vmatpush1.bf16.xpose.msra.mxu0 0
    %731 = vmatprep.subr.bf16.mxu0 0
    %732 = vmatpush1.bf16.xpose.msra.mxu0 0
    %733 = vmatprep.subr.bf16.mxu0 0
    %734 = vmatpush1.bf16.xpose.msra.mxu0 0
    %735 = vmatprep.subr.bf16.mxu0 0
    %736 = vmatpush1.bf16.xpose.msra.mxu0 0
    %737 = vmatprep.subr.bf16.mxu0 0
    %738 = vmatpush1.bf16.xpose.msra.mxu0 0
    %739 = vmatprep.subr.bf16.mxu0 0
    %740 = vmatpush1.bf16.xpose.msra.mxu0 0
    %741 = vmatprep.subr.bf16.mxu0 0
    %742 = vmatpush1.bf16.xpose.msra.mxu0 0
    %743 = vmatprep.subr.bf16.mxu0 0
    %744 = vmatpush1.bf16.xpose.msra.mxu0 0
    %745 = vmatprep.mubr.bf16.mxu0 0
    %746 = vmatmul.mubr.bf16.gmra.mrb[0].mxu0 %v708
    %v747 = vpop.f32.mrb[0].mxu0
    %v748 = vadd.f32 %v592, %v747
    %v749 = vpop.f32.mrb[0].mxu0
    %v750 = vpop.f32.mrb[0].mxu0
    %v751 = vpop.f32.mrb[0].mxu0
    %752 = vdwg.mxu0
    %v753 = vsel %vm129, %v748, -inf
    %754 = vmax.xlane.f32.xlu0 %v753
    %v755 = vpop.xlane.xlu0 %754
    %v756 = vsub.f32 %v748, %v755
    %v757 = vmul.f32 %v756, 1.442695
    %v758 = vpow.pop %v757
    %v759 = vsel %vm129, %v758, 0.0
    %760 = vadd.xlane.f32.xlu0 %v759
    %v761 = vpop.xlane.xlu0 %760
    %v762 = vpack.c.bf16 %v758, %v758
    %763 = vrot.lane.b32.xlu0 %v587, 56
    %v764 = vpop.permute.xlu0 %763
    %v766 = vsel %vm129, %v762, 0
    %v769 = vsel %vm191, %v764, 0
    %771 = vmatprep.subr.bf16.mxu0 0
    %772 = vmatpush1.bf16.msra.mxu0 %v769
    %773 = vmatprep.subr.bf16.mxu0 0
    %774 = vmatpush1.bf16.msra.mxu0 0
    %775 = vmatprep.subr.bf16.mxu0 0
    %776 = vmatpush1.bf16.msra.mxu0 0
    %777 = vmatprep.subr.bf16.mxu0 0
    %778 = vmatpush1.bf16.msra.mxu0 0
    %779 = vmatprep.subr.bf16.mxu0 0
    %780 = vmatpush1.bf16.msra.mxu0 0
    %781 = vmatprep.subr.bf16.mxu0 0
    %782 = vmatpush1.bf16.msra.mxu0 0
    %783 = vmatprep.subr.bf16.mxu0 0
    %784 = vmatpush1.bf16.msra.mxu0 0
    %785 = vmatprep.subr.bf16.mxu0 0
    %786 = vmatpush1.bf16.msra.mxu0 0
    %787 = vmatprep.subr.bf16.mxu0 0
    %788 = vmatpush1.bf16.msra.mxu0 0
    %789 = vmatprep.subr.bf16.mxu0 0
    %790 = vmatpush1.bf16.msra.mxu0 0
    %791 = vmatprep.subr.bf16.mxu0 0
    %792 = vmatpush1.bf16.msra.mxu0 0
    %793 = vmatprep.subr.bf16.mxu0 0
    %794 = vmatpush1.bf16.msra.mxu0 0
    %795 = vmatprep.subr.bf16.mxu0 0
    %796 = vmatpush1.bf16.msra.mxu0 0
    %797 = vmatprep.subr.bf16.mxu0 0
    %798 = vmatpush1.bf16.msra.mxu0 0
    %799 = vmatprep.subr.bf16.mxu0 0
    %800 = vmatpush1.bf16.msra.mxu0 0
    %801 = vmatprep.subr.bf16.mxu0 0
    %802 = vmatpush1.bf16.msra.mxu0 0
    %803 = vmatprep.mubr.bf16.mxu0 0
    %804 = vmatmul.mubr.bf16.gmra.mrb[0].mxu0 %v766
    %v805 = vpop.f32.mrb[0].mxu0
    %v806 = vadd.f32 0.0, %v805
    %v807 = vpop.f32.mrb[0].mxu0
    %v808 = vpop.f32.mrb[0].mxu0
    %v809 = vpop.f32.mrb[0].mxu0
    %810 = vdwg.mxu0
    %v811 = vrcp.pop %v761
    %v812 = vmul.f32 %v806, %v811
    %813 = vrot.lane.b32.xlu0 %v587, 112
    %v814 = vpop.permute.xlu0 %813
    %815 = vrot.lane.b32.xlu0 %v587, 80
    %v816 = vpop.permute.xlu0 %815
    %v818 = vsel %vm129, %v814, 0
    %v821 = vsel %vm129, %v816, 0
    %823 = vmatprep.subr.bf16.mxu0 0
    %824 = vmatpush1.bf16.xpose.msra.mxu0 %v821
    %825 = vmatprep.subr.bf16.mxu0 0
    %826 = vmatpush1.bf16.xpose.msra.mxu0 0
    %827 = vmatprep.subr.bf16.mxu0 0
    %828 = vmatpush1.bf16.xpose.msra.mxu0 0
    %829 = vmatprep.subr.bf16.mxu0 0
    %830 = vmatpush1.bf16.xpose.msra.mxu0 0
    %831 = vmatprep.subr.bf16.mxu0 0
    %832 = vmatpush1.bf16.xpose.msra.mxu0 0
    %833 = vmatprep.subr.bf16.mxu0 0
    %834 = vmatpush1.bf16.xpose.msra.mxu0 0
    %835 = vmatprep.subr.bf16.mxu0 0
    %836 = vmatpush1.bf16.xpose.msra.mxu0 0
    %837 = vmatprep.subr.bf16.mxu0 0
    %838 = vmatpush1.bf16.xpose.msra.mxu0 0
    %839 = vmatprep.subr.bf16.mxu0 0
    %840 = vmatpush1.bf16.xpose.msra.mxu0 0
    %841 = vmatprep.subr.bf16.mxu0 0
    %842 = vmatpush1.bf16.xpose.msra.mxu0 0
    %843 = vmatprep.subr.bf16.mxu0 0
    %844 = vmatpush1.bf16.xpose.msra.mxu0 0
    %845 = vmatprep.subr.bf16.mxu0 0
    %846 = vmatpush1.bf16.xpose.msra.mxu0 0
    %847 = vmatprep.subr.bf16.mxu0 0
    %848 = vmatpush1.bf16.xpose.msra.mxu0 0
    %849 = vmatprep.subr.bf16.mxu0 0
    %850 = vmatpush1.bf16.xpose.msra.mxu0 0
    %851 = vmatprep.subr.bf16.mxu0 0
    %852 = vmatpush1.bf16.xpose.msra.mxu0 0
    %853 = vmatprep.subr.bf16.mxu0 0
    %854 = vmatpush1.bf16.xpose.msra.mxu0 0
    %855 = vmatprep.mubr.bf16.mxu0 0
    %856 = vmatmul.mubr.bf16.gmra.mrb[0].mxu0 %v818
    %v857 = vpop.f32.mrb[0].mxu0
    %v858 = vadd.f32 %v592, %v857
    %v859 = vpop.f32.mrb[0].mxu0
    %v860 = vpop.f32.mrb[0].mxu0
    %v861 = vpop.f32.mrb[0].mxu0
    %862 = vdwg.mxu0
    %v863 = vsel %vm129, %v858, -inf
    %864 = vmax.xlane.f32.xlu0 %v863
    %v865 = vpop.xlane.xlu0 %864
    %v866 = vsub.f32 %v858, %v865
    %v867 = vmul.f32 %v866, 1.442695
    %v868 = vpow.pop %v867
    %v869 = vsel %vm129, %v868, 0.0
    %870 = vadd.xlane.f32.xlu0 %v869
    %v871 = vpop.xlane.xlu0 %870
    %v872 = vpack.c.bf16 %v868, %v868
    %873 = vrot.lane.b32.xlu0 %v587, 48
    %v874 = vpop.permute.xlu0 %873
    %v876 = vsel %vm129, %v872, 0
    %v879 = vsel %vm191, %v874, 0
    %881 = vmatprep.subr.bf16.mxu0 0
    %882 = vmatpush1.bf16.msra.mxu0 %v879
    %883 = vmatprep.subr.bf16.mxu0 0
    %884 = vmatpush1.bf16.msra.mxu0 0
    %885 = vmatprep.subr.bf16.mxu0 0
    %886 = vmatpush1.bf16.msra.mxu0 0
    %887 = vmatprep.subr.bf16.mxu0 0
    %888 = vmatpush1.bf16.msra.mxu0 0
    %889 = vmatprep.subr.bf16.mxu0 0
    %890 = vmatpush1.bf16.msra.mxu0 0
    %891 = vmatprep.subr.bf16.mxu0 0
    %892 = vmatpush1.bf16.msra.mxu0 0
    %893 = vmatprep.subr.bf16.mxu0 0
    %894 = vmatpush1.bf16.msra.mxu0 0
    %895 = vmatprep.subr.bf16.mxu0 0
    %896 = vmatpush1.bf16.msra.mxu0 0
    %897 = vmatprep.subr.bf16.mxu0 0
    %898 = vmatpush1.bf16.msra.mxu0 0
    %899 = vmatprep.subr.bf16.mxu0 0
    %900 = vmatpush1.bf16.msra.mxu0 0
    %901 = vmatprep.subr.bf16.mxu0 0
    %902 = vmatpush1.bf16.msra.mxu0 0
    %903 = vmatprep.subr.bf16.mxu0 0
    %904 = vmatpush1.bf16.msra.mxu0 0
    %905 = vmatprep.subr.bf16.mxu0 0
    %906 = vmatpush1.bf16.msra.mxu0 0
    %907 = vmatprep.subr.bf16.mxu0 0
    %908 = vmatpush1.bf16.msra.mxu0 0
    %909 = vmatprep.subr.bf16.mxu0 0
    %910 = vmatpush1.bf16.msra.mxu0 0
    %911 = vmatprep.subr.bf16.mxu0 0
    %912 = vmatpush1.bf16.msra.mxu0 0
    %913 = vmatprep.mubr.bf16.mxu0 0
    %914 = vmatmul.mubr.bf16.gmra.mrb[0].mxu0 %v876
    %v915 = vpop.f32.mrb[0].mxu0
    %v916 = vadd.f32 0.0, %v915
    %v917 = vpop.f32.mrb[0].mxu0
    %v918 = vpop.f32.mrb[0].mxu0
    %v919 = vpop.f32.mrb[0].mxu0
    %920 = vdwg.mxu0
    %v921 = vrcp.pop %v871
    %v922 = vmul.f32 %v916, %v921
    %923 = vrot.lane.b32.xlu0 %v587, 104
    %v924 = vpop.permute.xlu0 %923
    %925 = vrot.lane.b32.xlu0 %v587, 72
    %v926 = vpop.permute.xlu0 %925
    %v928 = vsel %vm129, %v924, 0
    %v931 = vsel %vm129, %v926, 0
    %933 = vmatprep.subr.bf16.mxu0 0
    %934 = vmatpush1.bf16.xpose.msra.mxu0 %v931
    %935 = vmatprep.subr.bf16.mxu0 0
    %936 = vmatpush1.bf16.xpose.msra.mxu0 0
    %937 = vmatprep.subr.bf16.mxu0 0
    %938 = vmatpush1.bf16.xpose.msra.mxu0 0
    %939 = vmatprep.subr.bf16.mxu0 0
    %940 = vmatpush1.bf16.xpose.msra.mxu0 0
    %941 = vmatprep.subr.bf16.mxu0 0
    %942 = vmatpush1.bf16.xpose.msra.mxu0 0
    %943 = vmatprep.subr.bf16.mxu0 0
    %944 = vmatpush1.bf16.xpose.msra.mxu0 0
    %945 = vmatprep.subr.bf16.mxu0 0
    %946 = vmatpush1.bf16.xpose.msra.mxu0 0
    %947 = vmatprep.subr.bf16.mxu0 0
    %948 = vmatpush1.bf16.xpose.msra.mxu0 0
    %949 = vmatprep.subr.bf16.mxu0 0
    %950 = vmatpush1.bf16.xpose.msra.mxu0 0
    %951 = vmatprep.subr.bf16.mxu0 0
    %952 = vmatpush1.bf16.xpose.msra.mxu0 0
    %953 = vmatprep.subr.bf16.mxu0 0
    %954 = vmatpush1.bf16.xpose.msra.mxu0 0
    %955 = vmatprep.subr.bf16.mxu0 0
    %956 = vmatpush1.bf16.xpose.msra.mxu0 0
    %957 = vmatprep.subr.bf16.mxu0 0
    %958 = vmatpush1.bf16.xpose.msra.mxu0 0
    %959 = vmatprep.subr.bf16.mxu0 0
    %960 = vmatpush1.bf16.xpose.msra.mxu0 0
    %961 = vmatprep.subr.bf16.mxu0 0
    %962 = vmatpush1.bf16.xpose.msra.mxu0 0
    %963 = vmatprep.subr.bf16.mxu0 0
    %964 = vmatpush1.bf16.xpose.msra.mxu0 0
    %965 = vmatprep.mubr.bf16.mxu0 0
    %966 = vmatmul.mubr.bf16.gmra.mrb[0].mxu0 %v928
    %v967 = vpop.f32.mrb[0].mxu0
    %v968 = vadd.f32 %v592, %v967
    %v969 = vpop.f32.mrb[0].mxu0
    %v970 = vpop.f32.mrb[0].mxu0
    %v971 = vpop.f32.mrb[0].mxu0
    %972 = vdwg.mxu0
    %v973 = vsel %vm129, %v968, -inf
    %974 = vmax.xlane.f32.xlu0 %v973
    %v975 = vpop.xlane.xlu0 %974
    %v976 = vsub.f32 %v968, %v975
    %v977 = vmul.f32 %v976, 1.442695
    %v978 = vpow.pop %v977
    %v979 = vsel %vm129, %v978, 0.0
    %980 = vadd.xlane.f32.xlu0 %v979
    %v981 = vpop.xlane.xlu0 %980
    %v982 = vpack.c.bf16 %v978, %v978
    %983 = vrot.lane.b32.xlu0 %v587, 40
    %v984 = vpop.permute.xlu0 %983
    %v986 = vsel %vm129, %v982, 0
    %v989 = vsel %vm191, %v984, 0
    %991 = vmatprep.subr.bf16.mxu0 0
    %992 = vmatpush1.bf16.msra.mxu0 %v989
    %993 = vmatprep.subr.bf16.mxu0 0
    %994 = vmatpush1.bf16.msra.mxu0 0
    %995 = vmatprep.subr.bf16.mxu0 0
    %996 = vmatpush1.bf16.msra.mxu0 0
    %997 = vmatprep.subr.bf16.mxu0 0
    %998 = vmatpush1.bf16.msra.mxu0 0
    %999 = vmatprep.subr.bf16.mxu0 0
    %1000 = vmatpush1.bf16.msra.mxu0 0
    %1001 = vmatprep.subr.bf16.mxu0 0
    %1002 = vmatpush1.bf16.msra.mxu0 0
    %1003 = vmatprep.subr.bf16.mxu0 0
    %1004 = vmatpush1.bf16.msra.mxu0 0
    %1005 = vmatprep.subr.bf16.mxu0 0
    %1006 = vmatpush1.bf16.msra.mxu0 0
    %1007 = vmatprep.subr.bf16.mxu0 0
    %1008 = vmatpush1.bf16.msra.mxu0 0
    %1009 = vmatprep.subr.bf16.mxu0 0
    %1010 = vmatpush1.bf16.msra.mxu0 0
    %1011 = vmatprep.subr.bf16.mxu0 0
    %1012 = vmatpush1.bf16.msra.mxu0 0
    %1013 = vmatprep.subr.bf16.mxu0 0
    %1014 = vmatpush1.bf16.msra.mxu0 0
    %1015 = vmatprep.subr.bf16.mxu0 0
    %1016 = vmatpush1.bf16.msra.mxu0 0
    %1017 = vmatprep.subr.bf16.mxu0 0
    %1018 = vmatpush1.bf16.msra.mxu0 0
    %1019 = vmatprep.subr.bf16.mxu0 0
    %1020 = vmatpush1.bf16.msra.mxu0 0
    %1021 = vmatprep.subr.bf16.mxu0 0
    %1022 = vmatpush1.bf16.msra.mxu0 0
    %1023 = vmatprep.mubr.bf16.mxu0 0
    %1024 = vmatmul.mubr.bf16.gmra.mrb[0].mxu0 %v986
    %v1025 = vpop.f32.mrb[0].mxu0
    %v1026 = vadd.f32 0.0, %v1025
    %v1027 = vpop.f32.mrb[0].mxu0
    %v1028 = vpop.f32.mrb[0].mxu0
    %v1029 = vpop.f32.mrb[0].mxu0
    %1030 = vdwg.mxu0
    %v1031 = vrcp.pop %v981
    %v1032 = vmul.f32 %v1026, %v1031
    %1034 = vrot.lane.b32.xlu0 %v812, 8
    %v1035 = vpop.permute.xlu0 %1034
    %1038 = vrot.lane.b32.xlu0 %v922, 16
    %v1039 = vpop.permute.xlu0 %1038
    %1042 = vrot.lane.b32.xlu0 %v1032, 24
    %v1043 = vpop.permute.xlu0 %1042
    %v1045 = vsel %vm129, %v702, %v1035
    %v1046 = vsel %vm580, %v1045, %v1039
    %v1047 = vsel %vm582, %v1046, %v1043
    %s1048 = scalar_lea.vmem [#allocation7], 8
    %1049 = vst.msk [vmem:[%s1048] sm:$0xff] %vm73, %v1047
    // Predicated region
    $region26: #{tpu_custom_call.1} parent=1 // pred_check
      _
    $region27: #{tpu_custom_call.1} parent=1 // pred_check_branch
      %1051 = sbr.rel (0) target = $region29
    $region28: #{tpu_custom_call.1} parent=1 // pred_region
      %s1053 = ssub.s32 256, 256
      %1054 = vsyncadd [#allocation4], %s1053
      %s1055 = sshll.u32 [#allocation7], 4
      %s1056 = int_to_ptr.vmem [resolvable:$true] %s1055
      %1061 = dma.vmem_to_hbm [thread:$0]  %s1056, 256, %s4, [#allocation4], 128, 128, 8
    $region29: #{tpu_custom_call.1} parent=1 // pred_fallthru
      _
    // Predicated region
    $region30: #{tpu_custom_call.1} parent=1 // pred_check
      _
    $region31: #{tpu_custom_call.1} parent=1 // pred_check_branch
      %1063 = sbr.rel (0) target = $region33
    $region32: #{tpu_custom_call.1} parent=1 // pred_region
      %1064 = dma.done [#allocation4], 256
    $region33: #{tpu_custom_call.1} parent=1 // pred_fallthru
      _
    %1065 = vsyncpa [#allocation3], 1
    %1066 = vsyncpa [#allocation6], 1
    %1067 = vsyncpa [#allocation4], 1

</llo_original>
